<compile_context>
chip_gen: v7x
topology: tpu7x:2x2x1
jax: 0.10.0
libtpu: 0.0.40
codegen_flags: <defaults>
</compile_context>

<pallas_src>
import functools
import math

import jax
import jax.numpy as jnp
from jax.experimental import pallas as pl
from jax.experimental.pallas import tpu as pltpu


_SQRT_2_OVER_PI = math.sqrt(2.0 / math.pi)
_MIB = 1 << 20


def _layernorm(x, gamma, beta, eps):
    # BERT-pytorch LayerNorm: unbiased std (ddof=1), gamma*(x-mean)/(std+eps)+beta.
    d = x.shape[-1]
    mean = jnp.mean(x, axis=-1, keepdims=True)
    var = jnp.sum((x - mean) ** 2, axis=-1, keepdims=True) * (1.0 / (d - 1))
    # Exact reciprocal for LN statistics (approx is reserved for the softmax denom).
    inv = pl.reciprocal(jnp.sqrt(var) + eps, approx=False)
    return gamma * (x - mean) * inv + beta


def _gelu_tanh(x):
    # GELU module from BERT-pytorch (tanh approximation).
    return 0.5 * x * (1.0 + jnp.tanh(_SQRT_2_OVER_PI * (x + 0.044715 * x * x * x)))


# --------------------------- stage 1: LN1 + fused QKV projection ---------------------------
def qkv_proj_kernel(x_ref, ln1_g_ref, ln1_b_ref, wqkv_ref, bqkv_ref,
                    q_ref, k_ref, v_ref, *, num_heads):
    D = x_ref.shape[-1]
    dk = D // num_heads
    cdt = wqkv_ref.dtype                                   # matmul operand dtype (f32 or bf16)

    x = x_ref[0].astype(jnp.float32)                       # (Ts, D)
    xn = _layernorm(x, ln1_g_ref[0].astype(jnp.float32),
                    ln1_b_ref[0].astype(jnp.float32), 1e-6)
    qkv = jnp.dot(xn.astype(cdt), wqkv_ref[...],
                  preferred_element_type=jnp.float32)      # (Ts, 3D)
    qkv = (qkv + bqkv_ref[0].astype(jnp.float32)).astype(cdt)

    # Head-major stores: the per-head lane slices happen ONCE per (batch, seq-tile),
    # not inside the per-q-tile attention loop.
    for h in range(num_heads):
        lo = h * dk
        q_ref[0, h] = qkv[:, lo:lo + dk]
        k_ref[0, h] = qkv[:, D + lo:D + lo + dk]
        v_ref[0, h] = qkv[:, 2 * D + lo:2 * D + lo + dk]


# --------------------------- stage 2: attention + output sublayer (FFN) ---------------------------
def attn_ffn_kernel(x_ref, mask_ref, q_ref, k_ref, v_ref,
                    wo_ref, bo_ref, ln2_g_ref, ln2_b_ref,
                    w1_ref, b1_ref, w2_ref, b2_ref,
                    o_ref,
                    attn_cat_ref,
                    *, num_heads, approx_recip):
    _, H, Tq, dk = q_ref.shape
    D = H * dk
    cdt = wo_ref.dtype
    eps = 1e-6

    q = q_ref[0]                                           # (H, Tq, dk)
    k = k_ref[0]                                           # (H, S,  dk)
    v = v_ref[0]                                           # (H, S,  dk)

    # Additive mask, loop/head invariant (int8 input; 4x less DMA than int32).
    madd = jnp.where(mask_ref[0] == 0, jnp.float32(-1e9), jnp.float32(0.0))  # (Tq, S)

    scale = jnp.float32(1.0 / math.sqrt(dk))
    # All heads at once, contracting last dims -- no materialized K^T, no per-head loop.
    s = jnp.einsum("hqd,hkd->hqk", q, k,
                   preferred_element_type=jnp.float32)     # (H, Tq, S)
    s = s * scale + madd[None, :, :]
    s = s - jnp.max(s, axis=-1, keepdims=True)
    p = jnp.exp(s)
    p = p * pl.reciprocal(jnp.sum(p, axis=-1, keepdims=True), approx=approx_recip)
    oh = jnp.einsum("hqk,hkd->hqd", p.astype(cdt), v,
                    preferred_element_type=jnp.float32)    # (H, Tq, dk)

    # Un-folded output projection: assemble heads along lanes in a VMEM scratch
    # (static offsets, H small stores), then ONE full-depth matmul with Wo.
    for h in range(num_heads):
        attn_cat_ref[:, h * dk:(h + 1) * dk] = oh[h].astype(cdt)
    attn = jnp.dot(attn_cat_ref[...], wo_ref[...],
                   preferred_element_type=jnp.float32) + bo_ref[0].astype(jnp.float32)

    x_tile = x_ref[0].astype(jnp.float32)                  # (Tq, D) residual
    x1 = x_tile + attn                                     # attention dropout -> identity

    # ---------------- output sublayer: x1 + FFN(LN(x1)) ----------------
    xn2 = _layernorm(x1, ln2_g_ref[0].astype(jnp.float32),
                     ln2_b_ref[0].astype(jnp.float32), eps)
    hid = _gelu_tanh(jnp.dot(xn2.astype(cdt), w1_ref[...],
                             preferred_element_type=jnp.float32)
                     + b1_ref[0].astype(jnp.float32))
    ffn = jnp.dot(hid.astype(cdt), w2_ref[...],
                  preferred_element_type=jnp.float32) + b2_ref[0].astype(jnp.float32)
    x2 = x1 + ffn                                          # FFN dropout -> identity

    o_ref[0] = x2.astype(o_ref.dtype)                      # final dropout -> identity


def _vmem_limit(nbytes):
    # 2x headroom for compiler temporaries; floor 8 MiB, cap 64 MiB (v7x physical VMEM).
    return int(min(max(2 * nbytes, 8 * _MIB), 64 * _MIB))


def transformer_block(x, mask, params, num_heads, *, q_tile=None):
    B, S, D = x.shape
    d_ff = params["w1"].shape[1]
    dk = D // num_heads
    cdt = params["wq"].dtype                               # compute dtype (f32 or bf16)
    approx_recip = bool(cdt == jnp.bfloat16)

    if q_tile is None:
        q_tile = S if S <= 128 else 128                    # flash-style query tiling for long S
    assert S % q_tile == 0
    n_q = S // q_tile

    mask = mask.astype(jnp.int8)                           # minimal mask bytes on the wire

    # Host-side packing: fused QKV weight (D, 3D) and bias (1, 3D); columns of each
    # third are already head-contiguous (head h -> cols h*dk:(h+1)*dk).
    wqkv = jnp.concatenate([params["wq"], params["wk"], params["wv"]], axis=1)
    bqkv = jnp.concatenate([params["bq"], params["bk"], params["bv"]], axis=1)

    csize = int(jnp.dtype(cdt).itemsize)
    xsize = int(x.dtype.itemsize)

    def nbytes(a):
        return int(a.size) * a.dtype.itemsize

    def run(single_buffer_weights):
        wkw = dict(pipeline_mode=pl.Buffered(1)) if single_buffer_weights else {}
        wbuf = 1 if single_buffer_weights else 2

        def wspec(shape):
            # Constant block index -> DMA'd once, stays VMEM-resident (single buffer).
            return pl.BlockSpec(shape, lambda b, i: (0, 0), **wkw)

        # ------------------- stage 1 call: LN1 + QKV, head-major outputs -------------------
        nb1 = (2 * q_tile * D * xsize                       # x tile (double-buffered)
               + wbuf * (D * 3 * D + 3 * D + 2 * D) * csize  # Wqkv + bqkv + LN1
               + 3 * 2 * q_tile * D * csize                 # Q/K/V output tiles
               + 2 * q_tile * 3 * D * 4)                    # f32 temporaries
        qkv_in_specs = [
            pl.BlockSpec((1, q_tile, D), lambda b, i: (b, i, 0)),    # x tile
            wspec((1, D)), wspec((1, D)),                            # LN1 gamma, beta
            wspec((D, 3 * D)), wspec((1, 3 * D)),                    # fused Wqkv, bqkv
        ]
        qkv_out_specs = tuple(
            pl.BlockSpec((1, num_heads, q_tile, dk), lambda b, i: (b, 0, i, 0))
            for _ in range(3))
        qkv_out_shape = tuple(
            jax.ShapeDtypeStruct((B, num_heads, S, dk), cdt) for _ in range(3))
        qkv_fn = pl.pallas_call(
            functools.partial(qkv_proj_kernel, num_heads=num_heads),
            out_shape=qkv_out_shape,
            grid=(B, n_q),
            in_specs=qkv_in_specs,
            out_specs=qkv_out_specs,
            compiler_params=pltpu.CompilerParams(
                dimension_semantics=("parallel", "parallel"),
                vmem_limit_bytes=_vmem_limit(nb1)),
            cost_estimate=pl.CostEstimate(
                flops=2 * B * S * D * 3 * D,
                transcendentals=0,
                bytes_accessed=(nbytes(x) + nbytes(wqkv) + nbytes(bqkv)
                                + nbytes(params["ln1_g"]) + nbytes(params["ln1_b"])
                                + 3 * B * S * D * csize)),
        )
        q_hm, k_hm, v_hm = qkv_fn(x, params["ln1_g"], params["ln1_b"], wqkv, bqkv)

        # ------------------- stage 2 call: attention + FFN, per q-tile -------------------
        nb2 = (2 * q_tile * D * xsize                        # x residual tile
               + 2 * q_tile * S                              # int8 mask tile
               + 2 * q_tile * D * csize                      # Q tile
               + 2 * 2 * S * D * csize                       # K and V (whole seq per batch)
               + wbuf * (D * D + 2 * D * d_ff + 6 * D + d_ff) * csize   # weights
               + q_tile * D * csize                          # attn_cat scratch
               + 2 * q_tile * D * xsize                      # output tile
               + 2 * (num_heads * q_tile * S + q_tile * d_ff + q_tile * D) * 4)  # f32 temps
        attn_in_specs = [
            pl.BlockSpec((1, q_tile, D), lambda b, i: (b, i, 0)),               # x residual tile
            pl.BlockSpec((1, q_tile, S), lambda b, i: (b, i, 0)),               # int8 mask tile
            pl.BlockSpec((1, num_heads, q_tile, dk), lambda b, i: (b, 0, i, 0)),  # Q tile
            pl.BlockSpec((1, num_heads, S, dk), lambda b, i: (b, 0, 0, 0)),     # K (per batch)
            pl.BlockSpec((1, num_heads, S, dk), lambda b, i: (b, 0, 0, 0)),     # V (per batch)
            wspec((D, D)), wspec((1, D)),                                        # Wo, bo
            wspec((1, D)), wspec((1, D)),                                        # LN2 gamma, beta
            wspec((D, d_ff)), wspec((1, d_ff)),                                  # FFN W1, b1
            wspec((d_ff, D)), wspec((1, D)),                                     # FFN W2, b2
        ]
        out_spec = pl.BlockSpec((1, q_tile, D), lambda b, i: (b, i, 0))
        w_bytes = sum(nbytes(params[k]) for k in
                      ("wo", "bo", "ln2_g", "ln2_b", "w1", "b1", "w2", "b2"))
        attn_fn = pl.pallas_call(
            functools.partial(attn_ffn_kernel, num_heads=num_heads,
                              approx_recip=approx_recip),
            out_shape=jax.ShapeDtypeStruct((B, S, D), x.dtype),
            grid=(B, n_q),
            in_specs=attn_in_specs,
            out_specs=out_spec,
            scratch_shapes=[pltpu.VMEM((q_tile, D), cdt)],   # head-concat buffer for Wo matmul
            compiler_params=pltpu.CompilerParams(
                dimension_semantics=("parallel", "parallel"),
                vmem_limit_bytes=_vmem_limit(nb2)),
            cost_estimate=pl.CostEstimate(
                flops=2 * B * S * (2 * S * D + D * D + 2 * D * d_ff),
                transcendentals=B * num_heads * S * S + B * S * d_ff,
                bytes_accessed=(2 * nbytes(x) + B * S * S
                                + 3 * B * S * D * csize + w_bytes)),
        )
        return attn_fn(x, mask, q_hm, k_hm, v_hm,
                       params["wo"], params["bo"],
                       params["ln2_g"], params["ln2_b"],
                       params["w1"], params["b1"], params["w2"], params["b2"])

    try:
        return run(single_buffer_weights=True)
    except Exception:
        # Fallback for environments where pl.Buffered(1) single-buffering of constant
        # weight specs is not supported; semantics are identical, VMEM use is higher.
        return run(single_buffer_weights=False)


# ------------------------ pure-JAX reference ------------------------
def transformer_block_ref(x, mask, params, num_heads):
    B, S, D = x.shape
    dk = D // num_heads

    def ln(v, g, b, eps=1e-6):
        mean = jnp.mean(v, axis=-1, keepdims=True)
        var = jnp.sum((v - mean) ** 2, axis=-1, keepdims=True) / (D - 1)
        return g * (v - mean) / (jnp.sqrt(var) + eps) + b

    xn = ln(x, params["ln1_g"][0], params["ln1_b"][0])
    q = xn @ params["wq"] + params["bq"][0]
    k = xn @ params["wk"] + params["bk"][0]
    v = xn @ params["wv"] + params["bv"][0]
    q = q.reshape(B, S, num_heads, dk).transpose(0, 2, 1, 3)
    k = k.reshape(B, S, num_heads, dk).transpose(0, 2, 1, 3)
    v = v.reshape(B, S, num_heads, dk).transpose(0, 2, 1, 3)
    scores = jnp.einsum("bhqd,bhkd->bhqk", q, k) / math.sqrt(dk)
    scores = jnp.where(mask[:, None, :, :] == 0, -1e9, scores)
    p = jax.nn.softmax(scores, axis=-1)
    a = jnp.einsum("bhqk,bhkd->bhqd", p, v).transpose(0, 2, 1, 3).reshape(B, S, D)
    a = a @ params["wo"] + params["bo"][0]
    x1 = x + a
    xn2 = ln(x1, params["ln2_g"][0], params["ln2_b"][0])
    h = xn2 @ params["w1"] + params["b1"][0]
    h = 0.5 * h * (1.0 + jnp.tanh(math.sqrt(2.0 / math.pi) * (h + 0.044715 * h ** 3)))
    return x1 + (h @ params["w2"] + params["b2"][0])


if __name__ == "__main__":
    B, S, D = 2, 8, 32
    num_heads = 4
    d_ff = 4 * D

    key = jax.random.PRNGKey(0)
    keys = jax.random.split(key, 16)

    def init(k, shape, scale=0.05):
        return (scale * jax.random.normal(k, shape)).astype(jnp.float32)

    params = {
        "wq": init(keys[0], (D, D)), "bq": init(keys[1], (1, D)),
        "wk": init(keys[2], (D, D)), "bk": init(keys[3], (1, D)),
        "wv": init(keys[4], (D, D)), "bv": init(keys[5], (1, D)),
        "wo": init(keys[6], (D, D)), "bo": init(keys[7], (1, D)),
        "ln1_g": jnp.ones((1, D), jnp.float32), "ln1_b": jnp.zeros((1, D), jnp.float32),
        "ln2_g": jnp.ones((1, D), jnp.float32), "ln2_b": jnp.zeros((1, D), jnp.float32),
        "w1": init(keys[8], (D, d_ff)), "b1": init(keys[9], (1, d_ff)),
        "w2": init(keys[10], (d_ff, D)), "b2": init(keys[11], (1, D)),
    }

    x = jax.random.normal(keys[12], (B, S, D), dtype=jnp.float32)
    # Lower-triangular (causal-style) attend mask; nonzero = attend.
    mask = jnp.tril(jnp.ones((S, S), jnp.int32))[None, :, :].repeat(B, axis=0)

    # --- f32 path: exact-semantics check vs pure-JAX reference ---
    out = jax.block_until_ready(transformer_block(x, mask, params, num_heads))
    ref = transformer_block_ref(x, mask, params, num_heads)
    assert out.shape == (B, S, D) and out.dtype == jnp.float32
    assert jnp.allclose(out, ref, rtol=1e-4, atol=1e-4), "f32 mismatch vs pure-JAX reference"

    # --- bf16 path: bf16 matmul operands, f32 accumulation & statistics ---
    # TODO(synk): on this path Q/K/V and softmax probs round-trip through bf16 (activation
    #             quantization beyond weight-only quantization of the reference).
    params_bf16 = {k: v.astype(jnp.bfloat16) for k, v in params.items()}
    x_bf16 = x.astype(jnp.bfloat16)
    out_bf16 = jax.block_until_ready(transformer_block(x_bf16, mask, params_bf16, num_heads))
    params_q = {k: v.astype(jnp.bfloat16).astype(jnp.float32) for k, v in params.items()}
    ref_bf16 = transformer_block_ref(x_bf16.astype(jnp.float32), mask, params_q, num_heads)
    assert out_bf16.shape == (B, S, D) and out_bf16.dtype == jnp.bfloat16
    assert jnp.allclose(out_bf16.astype(jnp.float32), ref_bf16, rtol=2e-2, atol=2e-2), \
        "bf16 mismatch vs bf16-quantized reference"

    print("KERNEL_OK")
</pallas_src>

<mosaic_0001>
module attributes {stable_mosaic.version = 11 : i64} {
  func.func @qkv_proj_kernel(%arg0: i32, %arg1: i32, %arg2: memref<1x8x32xf32, #tpu.memory_space<vmem>>, %arg3: memref<1x32xf32, #tpu.memory_space<vmem>>, %arg4: memref<1x32xf32, #tpu.memory_space<vmem>>, %arg5: memref<32x96xf32, #tpu.memory_space<vmem>>, %arg6: memref<1x96xf32, #tpu.memory_space<vmem>>, %arg7: memref<1x4x8x8xf32, #tpu.memory_space<vmem>>, %arg8: memref<1x4x8x8xf32, #tpu.memory_space<vmem>>, %arg9: memref<1x4x8x8xf32, #tpu.memory_space<vmem>>) attributes {dimension_semantics = [#tpu.dimension_semantics<parallel>, #tpu.dimension_semantics<parallel>], iteration_bounds = array<i64: 2, 1>, scalar_prefetch = 0 : i64, scratch_operands = 0 : i64, tpu.core_type = #tpu.core_type<tc>, window_params = [{transform_indices = @transform_0, window_bounds = array<i64: 1, 8, 32>}, {pipeline_mode = #tpu.pipeline_mode<synchronous>, transform_indices = @transform_1, window_bounds = array<i64: 1, 32>}, {pipeline_mode = #tpu.pipeline_mode<synchronous>, transform_indices = @transform_2, window_bounds = array<i64: 1, 32>}, {pipeline_mode = #tpu.pipeline_mode<synchronous>, transform_indices = @transform_3, window_bounds = array<i64: 32, 96>}, {pipeline_mode = #tpu.pipeline_mode<synchronous>, transform_indices = @transform_4, window_bounds = array<i64: 1, 96>}, {transform_indices = @transform_5, window_bounds = array<i64: 1, 4, 8, 8>}, {transform_indices = @transform_6, window_bounds = array<i64: 1, 4, 8, 8>}, {transform_indices = @transform_7, window_bounds = array<i64: 1, 4, 8, 8>}]} {
    %c0 = arith.constant 0 : index
    %c0_0 = arith.constant 0 : index
    %c0_1 = arith.constant 0 : index
    %0 = vector.load %arg2[%c0, %c0_0, %c0_1] : memref<1x8x32xf32, #tpu.memory_space<vmem>>, vector<1x8x32xf32>
    %1 = vector.shape_cast %0 : vector<1x8x32xf32> to vector<8x32xf32>
    %c0_2 = arith.constant 0 : index
    %c0_3 = arith.constant 0 : index
    %2 = vector.load %arg3[%c0_2, %c0_3] : memref<1x32xf32, #tpu.memory_space<vmem>>, vector<1x32xf32>
    %3 = vector.shape_cast %2 : vector<1x32xf32> to vector<32xf32>
    %c0_4 = arith.constant 0 : index
    %c0_5 = arith.constant 0 : index
    %4 = vector.load %arg4[%c0_4, %c0_5] : memref<1x32xf32, #tpu.memory_space<vmem>>, vector<1x32xf32>
    %5 = vector.shape_cast %4 : vector<1x32xf32> to vector<32xf32>
    %cst = arith.constant dense<0.000000e+00> : vector<8xf32>
    %6 = vector.multi_reduction <add>, %1, %cst [1] : vector<8x32xf32> to vector<8xf32>
    %7 = vector.shape_cast %6 : vector<8xf32> to vector<8x1xf32>
    %cst_6 = arith.constant 3.200000e+01 : f32
    %8 = vector.broadcast %cst_6 : f32 to vector<8x1xf32>
    %9 = arith.divf %7, %8 : vector<8x1xf32>
    %10 = vector.broadcast %9 : vector<8x1xf32> to vector<8x32xf32>
    %11 = arith.subf %1, %10 : vector<8x32xf32>
    %12 = arith.mulf %11, %11 : vector<8x32xf32>
    %cst_7 = arith.constant dense<0.000000e+00> : vector<8xf32>
    %13 = vector.multi_reduction <add>, %12, %cst_7 [1] : vector<8x32xf32> to vector<8xf32>
    %14 = vector.shape_cast %13 : vector<8xf32> to vector<8x1xf32>
    %cst_8 = arith.constant 0.0322580636 : f32
    %15 = vector.broadcast %cst_8 : f32 to vector<8x1xf32>
    %16 = arith.mulf %14, %15 : vector<8x1xf32>
    %17 = math.sqrt %16 : vector<8x1xf32>
    %cst_9 = arith.constant 9.99999997E-7 : f32
    %18 = vector.broadcast %cst_9 : f32 to vector<8x1xf32>
    %19 = arith.addf %17, %18 : vector<8x1xf32>
    %20 = tpu.reciprocal %19 : vector<8x1xf32> -> vector<8x1xf32>
    %21 = vector.broadcast %9 : vector<8x1xf32> to vector<8x32xf32>
    %22 = arith.subf %1, %21 : vector<8x32xf32>
    %23 = vector.shape_cast %3 : vector<32xf32> to vector<1x32xf32>
    %24 = vector.broadcast %23 : vector<1x32xf32> to vector<8x32xf32>
    %25 = arith.mulf %24, %22 : vector<8x32xf32>
    %26 = vector.broadcast %20 : vector<8x1xf32> to vector<8x32xf32>
    %27 = arith.mulf %25, %26 : vector<8x32xf32>
    %28 = vector.shape_cast %5 : vector<32xf32> to vector<1x32xf32>
    %29 = vector.broadcast %28 : vector<1x32xf32> to vector<8x32xf32>
    %30 = arith.addf %27, %29 : vector<8x32xf32>
    %c0_10 = arith.constant 0 : index
    %c0_11 = arith.constant 0 : index
    %31 = vector.load %arg5[%c0_10, %c0_11] : memref<32x96xf32, #tpu.memory_space<vmem>>, vector<32x96xf32>
    %cst_12 = arith.constant dense<0.000000e+00> : vector<8x96xf32>
    %32 = tpu.matmul %30, %31, %cst_12 {dimension_numbers = #tpu.dot_dimension_numbers<[1], [0], [0], [1], [0, 0, 1, 1], [], []>} : vector<8x32xf32>, vector<32x96xf32>, vector<8x96xf32> -> vector<8x96xf32>
    %c0_13 = arith.constant 0 : index
    %c0_14 = arith.constant 0 : index
    %33 = vector.load %arg6[%c0_13, %c0_14] : memref<1x96xf32, #tpu.memory_space<vmem>>, vector<1x96xf32>
    %34 = vector.shape_cast %33 : vector<1x96xf32> to vector<96xf32>
    %35 = vector.shape_cast %34 : vector<96xf32> to vector<1x96xf32>
    %36 = vector.broadcast %35 : vector<1x96xf32> to vector<8x96xf32>
    %37 = arith.addf %32, %36 : vector<8x96xf32>
    %38 = vector.extract_strided_slice %37 {offsets = [0, 0], sizes = [8, 8], strides = [1, 1]} : vector<8x96xf32> to vector<8x8xf32>
    %c0_15 = arith.constant 0 : index
    %c0_16 = arith.constant 0 : index
    %c0_17 = arith.constant 0 : index
    %c0_18 = arith.constant 0 : index
    %39 = vector.load %arg7[%c0_15, %c0_16, %c0_17, %c0_18] : memref<1x4x8x8xf32, #tpu.memory_space<vmem>>, vector<1x1x8x8xf32>
    %40 = vector.shape_cast %39 : vector<1x1x8x8xf32> to vector<8x8xf32>
    %41 = vector.shape_cast %38 : vector<8x8xf32> to vector<1x1x8x8xf32>
    tpu.vector_store %arg7[%c0_15, %c0_16, %c0_17, %c0_18], %41 {strides = array<i32>} : memref<1x4x8x8xf32, #tpu.memory_space<vmem>>, vector<1x1x8x8xf32>,
    %42 = vector.extract_strided_slice %37 {offsets = [0, 32], sizes = [8, 8], strides = [1, 1]} : vector<8x96xf32> to vector<8x8xf32>
    %c0_19 = arith.constant 0 : index
    %c0_20 = arith.constant 0 : index
    %c0_21 = arith.constant 0 : index
    %c0_22 = arith.constant 0 : index
    %43 = vector.load %arg8[%c0_19, %c0_20, %c0_21, %c0_22] : memref<1x4x8x8xf32, #tpu.memory_space<vmem>>, vector<1x1x8x8xf32>
    %44 = vector.shape_cast %43 : vector<1x1x8x8xf32> to vector<8x8xf32>
    %45 = vector.shape_cast %42 : vector<8x8xf32> to vector<1x1x8x8xf32>
    tpu.vector_store %arg8[%c0_19, %c0_20, %c0_21, %c0_22], %45 {strides = array<i32>} : memref<1x4x8x8xf32, #tpu.memory_space<vmem>>, vector<1x1x8x8xf32>,
    %46 = vector.extract_strided_slice %37 {offsets = [0, 64], sizes = [8, 8], strides = [1, 1]} : vector<8x96xf32> to vector<8x8xf32>
    %c0_23 = arith.constant 0 : index
    %c0_24 = arith.constant 0 : index
    %c0_25 = arith.constant 0 : index
    %c0_26 = arith.constant 0 : index
    %47 = vector.load %arg9[%c0_23, %c0_24, %c0_25, %c0_26] : memref<1x4x8x8xf32, #tpu.memory_space<vmem>>, vector<1x1x8x8xf32>
    %48 = vector.shape_cast %47 : vector<1x1x8x8xf32> to vector<8x8xf32>
    %49 = vector.shape_cast %46 : vector<8x8xf32> to vector<1x1x8x8xf32>
    tpu.vector_store %arg9[%c0_23, %c0_24, %c0_25, %c0_26], %49 {strides = array<i32>} : memref<1x4x8x8xf32, #tpu.memory_space<vmem>>, vector<1x1x8x8xf32>,
    %50 = vector.extract_strided_slice %37 {offsets = [0, 8], sizes = [8, 8], strides = [1, 1]} : vector<8x96xf32> to vector<8x8xf32>
    %c0_27 = arith.constant 0 : index
    %c1 = arith.constant 1 : index
    %c0_28 = arith.constant 0 : index
    %c0_29 = arith.constant 0 : index
    %51 = vector.load %arg7[%c0_27, %c1, %c0_28, %c0_29] : memref<1x4x8x8xf32, #tpu.memory_space<vmem>>, vector<1x1x8x8xf32>
    %52 = vector.shape_cast %51 : vector<1x1x8x8xf32> to vector<8x8xf32>
    %53 = vector.shape_cast %50 : vector<8x8xf32> to vector<1x1x8x8xf32>
    tpu.vector_store %arg7[%c0_27, %c1, %c0_28, %c0_29], %53 {strides = array<i32>} : memref<1x4x8x8xf32, #tpu.memory_space<vmem>>, vector<1x1x8x8xf32>,
    %54 = vector.extract_strided_slice %37 {offsets = [0, 40], sizes = [8, 8], strides = [1, 1]} : vector<8x96xf32> to vector<8x8xf32>
    %c0_30 = arith.constant 0 : index
    %c1_31 = arith.constant 1 : index
    %c0_32 = arith.constant 0 : index
    %c0_33 = arith.constant 0 : index
    %55 = vector.load %arg8[%c0_30, %c1_31, %c0_32, %c0_33] : memref<1x4x8x8xf32, #tpu.memory_space<vmem>>, vector<1x1x8x8xf32>
    %56 = vector.shape_cast %55 : vector<1x1x8x8xf32> to vector<8x8xf32>
    %57 = vector.shape_cast %54 : vector<8x8xf32> to vector<1x1x8x8xf32>
    tpu.vector_store %arg8[%c0_30, %c1_31, %c0_32, %c0_33], %57 {strides = array<i32>} : memref<1x4x8x8xf32, #tpu.memory_space<vmem>>, vector<1x1x8x8xf32>,
    %58 = vector.extract_strided_slice %37 {offsets = [0, 72], sizes = [8, 8], strides = [1, 1]} : vector<8x96xf32> to vector<8x8xf32>
    %c0_34 = arith.constant 0 : index
    %c1_35 = arith.constant 1 : index
    %c0_36 = arith.constant 0 : index
    %c0_37 = arith.constant 0 : index
    %59 = vector.load %arg9[%c0_34, %c1_35, %c0_36, %c0_37] : memref<1x4x8x8xf32, #tpu.memory_space<vmem>>, vector<1x1x8x8xf32>
    %60 = vector.shape_cast %59 : vector<1x1x8x8xf32> to vector<8x8xf32>
    %61 = vector.shape_cast %58 : vector<8x8xf32> to vector<1x1x8x8xf32>
    tpu.vector_store %arg9[%c0_34, %c1_35, %c0_36, %c0_37], %61 {strides = array<i32>} : memref<1x4x8x8xf32, #tpu.memory_space<vmem>>, vector<1x1x8x8xf32>,
    %62 = vector.extract_strided_slice %37 {offsets = [0, 16], sizes = [8, 8], strides = [1, 1]} : vector<8x96xf32> to vector<8x8xf32>
    %c0_38 = arith.constant 0 : index
    %c2 = arith.constant 2 : index
    %c0_39 = arith.constant 0 : index
    %c0_40 = arith.constant 0 : index
    %63 = vector.load %arg7[%c0_38, %c2, %c0_39, %c0_40] : memref<1x4x8x8xf32, #tpu.memory_space<vmem>>, vector<1x1x8x8xf32>
    %64 = vector.shape_cast %63 : vector<1x1x8x8xf32> to vector<8x8xf32>
    %65 = vector.shape_cast %62 : vector<8x8xf32> to vector<1x1x8x8xf32>
    tpu.vector_store %arg7[%c0_38, %c2, %c0_39, %c0_40], %65 {strides = array<i32>} : memref<1x4x8x8xf32, #tpu.memory_space<vmem>>, vector<1x1x8x8xf32>,
    %66 = vector.extract_strided_slice %37 {offsets = [0, 48], sizes = [8, 8], strides = [1, 1]} : vector<8x96xf32> to vector<8x8xf32>
    %c0_41 = arith.constant 0 : index
    %c2_42 = arith.constant 2 : index
    %c0_43 = arith.constant 0 : index
    %c0_44 = arith.constant 0 : index
    %67 = vector.load %arg8[%c0_41, %c2_42, %c0_43, %c0_44] : memref<1x4x8x8xf32, #tpu.memory_space<vmem>>, vector<1x1x8x8xf32>
    %68 = vector.shape_cast %67 : vector<1x1x8x8xf32> to vector<8x8xf32>
    %69 = vector.shape_cast %66 : vector<8x8xf32> to vector<1x1x8x8xf32>
    tpu.vector_store %arg8[%c0_41, %c2_42, %c0_43, %c0_44], %69 {strides = array<i32>} : memref<1x4x8x8xf32, #tpu.memory_space<vmem>>, vector<1x1x8x8xf32>,
    %70 = vector.extract_strided_slice %37 {offsets = [0, 80], sizes = [8, 8], strides = [1, 1]} : vector<8x96xf32> to vector<8x8xf32>
    %c0_45 = arith.constant 0 : index
    %c2_46 = arith.constant 2 : index
    %c0_47 = arith.constant 0 : index
    %c0_48 = arith.constant 0 : index
    %71 = vector.load %arg9[%c0_45, %c2_46, %c0_47, %c0_48] : memref<1x4x8x8xf32, #tpu.memory_space<vmem>>, vector<1x1x8x8xf32>
    %72 = vector.shape_cast %71 : vector<1x1x8x8xf32> to vector<8x8xf32>
    %73 = vector.shape_cast %70 : vector<8x8xf32> to vector<1x1x8x8xf32>
    tpu.vector_store %arg9[%c0_45, %c2_46, %c0_47, %c0_48], %73 {strides = array<i32>} : memref<1x4x8x8xf32, #tpu.memory_space<vmem>>, vector<1x1x8x8xf32>,
    %74 = vector.extract_strided_slice %37 {offsets = [0, 24], sizes = [8, 8], strides = [1, 1]} : vector<8x96xf32> to vector<8x8xf32>
    %c0_49 = arith.constant 0 : index
    %c3 = arith.constant 3 : index
    %c0_50 = arith.constant 0 : index
    %c0_51 = arith.constant 0 : index
    %75 = vector.load %arg7[%c0_49, %c3, %c0_50, %c0_51] : memref<1x4x8x8xf32, #tpu.memory_space<vmem>>, vector<1x1x8x8xf32>
    %76 = vector.shape_cast %75 : vector<1x1x8x8xf32> to vector<8x8xf32>
    %77 = vector.shape_cast %74 : vector<8x8xf32> to vector<1x1x8x8xf32>
    tpu.vector_store %arg7[%c0_49, %c3, %c0_50, %c0_51], %77 {strides = array<i32>} : memref<1x4x8x8xf32, #tpu.memory_space<vmem>>, vector<1x1x8x8xf32>,
    %78 = vector.extract_strided_slice %37 {offsets = [0, 56], sizes = [8, 8], strides = [1, 1]} : vector<8x96xf32> to vector<8x8xf32>
    %c0_52 = arith.constant 0 : index
    %c3_53 = arith.constant 3 : index
    %c0_54 = arith.constant 0 : index
    %c0_55 = arith.constant 0 : index
    %79 = vector.load %arg8[%c0_52, %c3_53, %c0_54, %c0_55] : memref<1x4x8x8xf32, #tpu.memory_space<vmem>>, vector<1x1x8x8xf32>
    %80 = vector.shape_cast %79 : vector<1x1x8x8xf32> to vector<8x8xf32>
    %81 = vector.shape_cast %78 : vector<8x8xf32> to vector<1x1x8x8xf32>
    tpu.vector_store %arg8[%c0_52, %c3_53, %c0_54, %c0_55], %81 {strides = array<i32>} : memref<1x4x8x8xf32, #tpu.memory_space<vmem>>, vector<1x1x8x8xf32>,
    %82 = vector.extract_strided_slice %37 {offsets = [0, 88], sizes = [8, 8], strides = [1, 1]} : vector<8x96xf32> to vector<8x8xf32>
    %c0_56 = arith.constant 0 : index
    %c3_57 = arith.constant 3 : index
    %c0_58 = arith.constant 0 : index
    %c0_59 = arith.constant 0 : index
    %83 = vector.load %arg9[%c0_56, %c3_57, %c0_58, %c0_59] : memref<1x4x8x8xf32, #tpu.memory_space<vmem>>, vector<1x1x8x8xf32>
    %84 = vector.shape_cast %83 : vector<1x1x8x8xf32> to vector<8x8xf32>
    %85 = vector.shape_cast %82 : vector<8x8xf32> to vector<1x1x8x8xf32>
    tpu.vector_store %arg9[%c0_56, %c3_57, %c0_58, %c0_59], %85 {strides = array<i32>} : memref<1x4x8x8xf32, #tpu.memory_space<vmem>>, vector<1x1x8x8xf32>,
    return
  }
  func.func @transform_0(%arg0: i32, %arg1: i32) -> (i32, i32, i32) {
    %c0_i32 = arith.constant 0 : i32
    %c0_i32_0 = arith.constant 0 : i32
    return %arg0, %arg1, %c0_i32 : i32, i32, i32
  }
  func.func @transform_1(%arg0: i32, %arg1: i32) -> (i32, i32) {
    %c0_i32 = arith.constant 0 : i32
    %c0_i32_0 = arith.constant 0 : i32
    %c0_i32_1 = arith.constant 0 : i32
    return %c0_i32, %c0_i32_0 : i32, i32
  }
  func.func @transform_2(%arg0: i32, %arg1: i32) -> (i32, i32) {
    %c0_i32 = arith.constant 0 : i32
    %c0_i32_0 = arith.constant 0 : i32
    %c0_i32_1 = arith.constant 0 : i32
    return %c0_i32, %c0_i32_0 : i32, i32
  }
  func.func @transform_3(%arg0: i32, %arg1: i32) -> (i32, i32) {
    %c0_i32 = arith.constant 0 : i32
    %c0_i32_0 = arith.constant 0 : i32
    %c0_i32_1 = arith.constant 0 : i32
    return %c0_i32, %c0_i32_0 : i32, i32
  }
  func.func @transform_4(%arg0: i32, %arg1: i32) -> (i32, i32) {
    %c0_i32 = arith.constant 0 : i32
    %c0_i32_0 = arith.constant 0 : i32
    %c0_i32_1 = arith.constant 0 : i32
    return %c0_i32, %c0_i32_0 : i32, i32
  }
  func.func @transform_5(%arg0: i32, %arg1: i32) -> (i32, i32, i32, i32) {
    %c0_i32 = arith.constant 0 : i32
    %c0_i32_0 = arith.constant 0 : i32
    %c0_i32_1 = arith.constant 0 : i32
    return %arg0, %c0_i32, %arg1, %c0_i32_0 : i32, i32, i32, i32
  }
  func.func @transform_6(%arg0: i32, %arg1: i32) -> (i32, i32, i32, i32) {
    %c0_i32 = arith.constant 0 : i32
    %c0_i32_0 = arith.constant 0 : i32
    %c0_i32_1 = arith.constant 0 : i32
    return %arg0, %c0_i32, %arg1, %c0_i32_0 : i32, i32, i32, i32
  }
  func.func @transform_7(%arg0: i32, %arg1: i32) -> (i32, i32, i32, i32) {
    %c0_i32 = arith.constant 0 : i32
    %c0_i32_0 = arith.constant 0 : i32
    %c0_i32_1 = arith.constant 0 : i32
    return %arg0, %c0_i32, %arg1, %c0_i32_0 : i32, i32, i32, i32
  }
}

module attributes {stable_mosaic.version = 11 : i64} {
  func.func @qkv_proj_kernel(%arg0: i32, %arg1: i32, %arg2: memref<1x8x32xf32, #tpu.memory_space<vmem>>, %arg3: memref<1x32xf32, #tpu.memory_space<vmem>>, %arg4: memref<1x32xf32, #tpu.memory_space<vmem>>, %arg5: memref<32x96xf32, #tpu.memory_space<vmem>>, %arg6: memref<1x96xf32, #tpu.memory_space<vmem>>, %arg7: memref<1x4x8x8xf32, #tpu.memory_space<vmem>>, %arg8: memref<1x4x8x8xf32, #tpu.memory_space<vmem>>, %arg9: memref<1x4x8x8xf32, #tpu.memory_space<vmem>>) attributes {dimension_semantics = [#tpu.dimension_semantics<parallel>, #tpu.dimension_semantics<parallel>], iteration_bounds = array<i64: 2, 1>, scalar_prefetch = 0 : i64, scratch_operands = 0 : i64, tpu.core_type = #tpu.core_type<tc>, window_params = [{transform_indices = @transform_0, window_bounds = array<i64: 1, 8, 32>}, {pipeline_mode = #tpu.pipeline_mode<synchronous>, transform_indices = @transform_1, window_bounds = array<i64: 1, 32>}, {pipeline_mode = #tpu.pipeline_mode<synchronous>, transform_indices = @transform_2, window_bounds = array<i64: 1, 32>}, {pipeline_mode = #tpu.pipeline_mode<synchronous>, transform_indices = @transform_3, window_bounds = array<i64: 32, 96>}, {pipeline_mode = #tpu.pipeline_mode<synchronous>, transform_indices = @transform_4, window_bounds = array<i64: 1, 96>}, {transform_indices = @transform_5, window_bounds = array<i64: 1, 4, 8, 8>}, {transform_indices = @transform_6, window_bounds = array<i64: 1, 4, 8, 8>}, {transform_indices = @transform_7, window_bounds = array<i64: 1, 4, 8, 8>}]} {
    %c0 = arith.constant 0 : index
    %c0_0 = arith.constant 0 : index
    %c0_1 = arith.constant 0 : index
    %0 = vector.load %arg2[%c0, %c0_0, %c0_1] : memref<1x8x32xf32, #tpu.memory_space<vmem>>, vector<1x8x32xf32>
    %1 = vector.shape_cast %0 : vector<1x8x32xf32> to vector<8x32xf32>
    %c0_2 = arith.constant 0 : index
    %c0_3 = arith.constant 0 : index
    %2 = vector.load %arg3[%c0_2, %c0_3] : memref<1x32xf32, #tpu.memory_space<vmem>>, vector<1x32xf32>
    %3 = vector.shape_cast %2 : vector<1x32xf32> to vector<32xf32>
    %c0_4 = arith.constant 0 : index
    %c0_5 = arith.constant 0 : index
    %4 = vector.load %arg4[%c0_4, %c0_5] : memref<1x32xf32, #tpu.memory_space<vmem>>, vector<1x32xf32>
    %5 = vector.shape_cast %4 : vector<1x32xf32> to vector<32xf32>
    %cst = arith.constant dense<0.000000e+00> : vector<8xf32>
    %6 = vector.multi_reduction <add>, %1, %cst [1] : vector<8x32xf32> to vector<8xf32>
    %7 = vector.shape_cast %6 : vector<8xf32> to vector<8x1xf32>
    %cst_6 = arith.constant 3.200000e+01 : f32
    %8 = vector.broadcast %cst_6 : f32 to vector<8x1xf32>
    %9 = arith.divf %7, %8 : vector<8x1xf32>
    %10 = vector.broadcast %9 : vector<8x1xf32> to vector<8x32xf32>
    %11 = arith.subf %1, %10 : vector<8x32xf32>
    %12 = arith.mulf %11, %11 : vector<8x32xf32>
    %cst_7 = arith.constant dense<0.000000e+00> : vector<8xf32>
    %13 = vector.multi_reduction <add>, %12, %cst_7 [1] : vector<8x32xf32> to vector<8xf32>
    %14 = vector.shape_cast %13 : vector<8xf32> to vector<8x1xf32>
    %cst_8 = arith.constant 0.0322580636 : f32
    %15 = vector.broadcast %cst_8 : f32 to vector<8x1xf32>
    %16 = arith.mulf %14, %15 : vector<8x1xf32>
    %17 = math.sqrt %16 : vector<8x1xf32>
    %cst_9 = arith.constant 9.99999997E-7 : f32
    %18 = vector.broadcast %cst_9 : f32 to vector<8x1xf32>
    %19 = arith.addf %17, %18 : vector<8x1xf32>
    %20 = tpu.reciprocal %19 : vector<8x1xf32> -> vector<8x1xf32>
    %21 = vector.broadcast %9 : vector<8x1xf32> to vector<8x32xf32>
    %22 = arith.subf %1, %21 : vector<8x32xf32>
    %23 = vector.shape_cast %3 : vector<32xf32> to vector<1x32xf32>
    %24 = vector.broadcast %23 : vector<1x32xf32> to vector<8x32xf32>
    %25 = arith.mulf %24, %22 : vector<8x32xf32>
    %26 = vector.broadcast %20 : vector<8x1xf32> to vector<8x32xf32>
    %27 = arith.mulf %25, %26 : vector<8x32xf32>
    %28 = vector.shape_cast %5 : vector<32xf32> to vector<1x32xf32>
    %29 = vector.broadcast %28 : vector<1x32xf32> to vector<8x32xf32>
    %30 = arith.addf %27, %29 : vector<8x32xf32>
    %c0_10 = arith.constant 0 : index
    %c0_11 = arith.constant 0 : index
    %31 = vector.load %arg5[%c0_10, %c0_11] : memref<32x96xf32, #tpu.memory_space<vmem>>, vector<32x96xf32>
    %cst_12 = arith.constant dense<0.000000e+00> : vector<8x96xf32>
    %32 = tpu.matmul %30, %31, %cst_12 {dimension_numbers = #tpu.dot_dimension_numbers<[1], [0], [0], [1], [0, 0, 1, 1], [], []>} : vector<8x32xf32>, vector<32x96xf32>, vector<8x96xf32> -> vector<8x96xf32>
    %c0_13 = arith.constant 0 : index
    %c0_14 = arith.constant 0 : index
    %33 = vector.load %arg6[%c0_13, %c0_14] : memref<1x96xf32, #tpu.memory_space<vmem>>, vector<1x96xf32>
    %34 = vector.shape_cast %33 : vector<1x96xf32> to vector<96xf32>
    %35 = vector.shape_cast %34 : vector<96xf32> to vector<1x96xf32>
    %36 = vector.broadcast %35 : vector<1x96xf32> to vector<8x96xf32>
    %37 = arith.addf %32, %36 : vector<8x96xf32>
    %38 = vector.extract_strided_slice %37 {offsets = [0, 0], sizes = [8, 8], strides = [1, 1]} : vector<8x96xf32> to vector<8x8xf32>
    %c0_15 = arith.constant 0 : index
    %c0_16 = arith.constant 0 : index
    %c0_17 = arith.constant 0 : index
    %c0_18 = arith.constant 0 : index
    %39 = vector.load %arg7[%c0_15, %c0_16, %c0_17, %c0_18] : memref<1x4x8x8xf32, #tpu.memory_space<vmem>>, vector<1x1x8x8xf32>
    %40 = vector.shape_cast %39 : vector<1x1x8x8xf32> to vector<8x8xf32>
    %41 = vector.shape_cast %38 : vector<8x8xf32> to vector<1x1x8x8xf32>
    tpu.vector_store %arg7[%c0_15, %c0_16, %c0_17, %c0_18], %41 {strides = array<i32>} : memref<1x4x8x8xf32, #tpu.memory_space<vmem>>, vector<1x1x8x8xf32>,
    %42 = vector.extract_strided_slice %37 {offsets = [0, 32], sizes = [8, 8], strides = [1, 1]} : vector<8x96xf32> to vector<8x8xf32>
    %c0_19 = arith.constant 0 : index
    %c0_20 = arith.constant 0 : index
    %c0_21 = arith.constant 0 : index
    %c0_22 = arith.constant 0 : index
    %43 = vector.load %arg8[%c0_19, %c0_20, %c0_21, %c0_22] : memref<1x4x8x8xf32, #tpu.memory_space<vmem>>, vector<1x1x8x8xf32>
    %44 = vector.shape_cast %43 : vector<1x1x8x8xf32> to vector<8x8xf32>
    %45 = vector.shape_cast %42 : vector<8x8xf32> to vector<1x1x8x8xf32>
    tpu.vector_store %arg8[%c0_19, %c0_20, %c0_21, %c0_22], %45 {strides = array<i32>} : memref<1x4x8x8xf32, #tpu.memory_space<vmem>>, vector<1x1x8x8xf32>,
    %46 = vector.extract_strided_slice %37 {offsets = [0, 64], sizes = [8, 8], strides = [1, 1]} : vector<8x96xf32> to vector<8x8xf32>
    %c0_23 = arith.constant 0 : index
    %c0_24 = arith.constant 0 : index
    %c0_25 = arith.constant 0 : index
    %c0_26 = arith.constant 0 : index
    %47 = vector.load %arg9[%c0_23, %c0_24, %c0_25, %c0_26] : memref<1x4x8x8xf32, #tpu.memory_space<vmem>>, vector<1x1x8x8xf32>
    %48 = vector.shape_cast %47 : vector<1x1x8x8xf32> to vector<8x8xf32>
    %49 = vector.shape_cast %46 : vector<8x8xf32> to vector<1x1x8x8xf32>
    tpu.vector_store %arg9[%c0_23, %c0_24, %c0_25, %c0_26], %49 {strides = array<i32>} : memref<1x4x8x8xf32, #tpu.memory_space<vmem>>, vector<1x1x8x8xf32>,
    %50 = vector.extract_strided_slice %37 {offsets = [0, 8], sizes = [8, 8], strides = [1, 1]} : vector<8x96xf32> to vector<8x8xf32>
    %c0_27 = arith.constant 0 : index
    %c1 = arith.constant 1 : index
    %c0_28 = arith.constant 0 : index
    %c0_29 = arith.constant 0 : index
    %51 = vector.load %arg7[%c0_27, %c1, %c0_28, %c0_29] : memref<1x4x8x8xf32, #tpu.memory_space<vmem>>, vector<1x1x8x8xf32>
    %52 = vector.shape_cast %51 : vector<1x1x8x8xf32> to vector<8x8xf32>
    %53 = vector.shape_cast %50 : vector<8x8xf32> to vector<1x1x8x8xf32>
    tpu.vector_store %arg7[%c0_27, %c1, %c0_28, %c0_29], %53 {strides = array<i32>} : memref<1x4x8x8xf32, #tpu.memory_space<vmem>>, vector<1x1x8x8xf32>,
    %54 = vector.extract_strided_slice %37 {offsets = [0, 40], sizes = [8, 8], strides = [1, 1]} : vector<8x96xf32> to vector<8x8xf32>
    %c0_30 = arith.constant 0 : index
    %c1_31 = arith.constant 1 : index
    %c0_32 = arith.constant 0 : index
    %c0_33 = arith.constant 0 : index
    %55 = vector.load %arg8[%c0_30, %c1_31, %c0_32, %c0_33] : memref<1x4x8x8xf32, #tpu.memory_space<vmem>>, vector<1x1x8x8xf32>
    %56 = vector.shape_cast %55 : vector<1x1x8x8xf32> to vector<8x8xf32>
    %57 = vector.shape_cast %54 : vector<8x8xf32> to vector<1x1x8x8xf32>
    tpu.vector_store %arg8[%c0_30, %c1_31, %c0_32, %c0_33], %57 {strides = array<i32>} : memref<1x4x8x8xf32, #tpu.memory_space<vmem>>, vector<1x1x8x8xf32>,
    %58 = vector.extract_strided_slice %37 {offsets = [0, 72], sizes = [8, 8], strides = [1, 1]} : vector<8x96xf32> to vector<8x8xf32>
    %c0_34 = arith.constant 0 : index
    %c1_35 = arith.constant 1 : index
    %c0_36 = arith.constant 0 : index
    %c0_37 = arith.constant 0 : index
    %59 = vector.load %arg9[%c0_34, %c1_35, %c0_36, %c0_37] : memref<1x4x8x8xf32, #tpu.memory_space<vmem>>, vector<1x1x8x8xf32>
    %60 = vector.shape_cast %59 : vector<1x1x8x8xf32> to vector<8x8xf32>
    %61 = vector.shape_cast %58 : vector<8x8xf32> to vector<1x1x8x8xf32>
    tpu.vector_store %arg9[%c0_34, %c1_35, %c0_36, %c0_37], %61 {strides = array<i32>} : memref<1x4x8x8xf32, #tpu.memory_space<vmem>>, vector<1x1x8x8xf32>,
    %62 = vector.extract_strided_slice %37 {offsets = [0, 16], sizes = [8, 8], strides = [1, 1]} : vector<8x96xf32> to vector<8x8xf32>
    %c0_38 = arith.constant 0 : index
    %c2 = arith.constant 2 : index
    %c0_39 = arith.constant 0 : index
    %c0_40 = arith.constant 0 : index
    %63 = vector.load %arg7[%c0_38, %c2, %c0_39, %c0_40] : memref<1x4x8x8xf32, #tpu.memory_space<vmem>>, vector<1x1x8x8xf32>
    %64 = vector.shape_cast %63 : vector<1x1x8x8xf32> to vector<8x8xf32>
    %65 = vector.shape_cast %62 : vector<8x8xf32> to vector<1x1x8x8xf32>
    tpu.vector_store %arg7[%c0_38, %c2, %c0_39, %c0_40], %65 {strides = array<i32>} : memref<1x4x8x8xf32, #tpu.memory_space<vmem>>, vector<1x1x8x8xf32>,
    %66 = vector.extract_strided_slice %37 {offsets = [0, 48], sizes = [8, 8], strides = [1, 1]} : vector<8x96xf32> to vector<8x8xf32>
    %c0_41 = arith.constant 0 : index
    %c2_42 = arith.constant 2 : index
    %c0_43 = arith.constant 0 : index
    %c0_44 = arith.constant 0 : index
    %67 = vector.load %arg8[%c0_41, %c2_42, %c0_43, %c0_44] : memref<1x4x8x8xf32, #tpu.memory_space<vmem>>, vector<1x1x8x8xf32>
    %68 = vector.shape_cast %67 : vector<1x1x8x8xf32> to vector<8x8xf32>
    %69 = vector.shape_cast %66 : vector<8x8xf32> to vector<1x1x8x8xf32>
    tpu.vector_store %arg8[%c0_41, %c2_42, %c0_43, %c0_44], %69 {strides = array<i32>} : memref<1x4x8x8xf32, #tpu.memory_space<vmem>>, vector<1x1x8x8xf32>,
    %70 = vector.extract_strided_slice %37 {offsets = [0, 80], sizes = [8, 8], strides = [1, 1]} : vector<8x96xf32> to vector<8x8xf32>
    %c0_45 = arith.constant 0 : index
    %c2_46 = arith.constant 2 : index
    %c0_47 = arith.constant 0 : index
    %c0_48 = arith.constant 0 : index
    %71 = vector.load %arg9[%c0_45, %c2_46, %c0_47, %c0_48] : memref<1x4x8x8xf32, #tpu.memory_space<vmem>>, vector<1x1x8x8xf32>
    %72 = vector.shape_cast %71 : vector<1x1x8x8xf32> to vector<8x8xf32>
    %73 = vector.shape_cast %70 : vector<8x8xf32> to vector<1x1x8x8xf32>
    tpu.vector_store %arg9[%c0_45, %c2_46, %c0_47, %c0_48], %73 {strides = array<i32>} : memref<1x4x8x8xf32, #tpu.memory_space<vmem>>, vector<1x1x8x8xf32>,
    %74 = vector.extract_strided_slice %37 {offsets = [0, 24], sizes = [8, 8], strides = [1, 1]} : vector<8x96xf32> to vector<8x8xf32>
    %c0_49 = arith.constant 0 : index
    %c3 = arith.constant 3 : index
    %c0_50 = arith.constant 0 : index
    %c0_51 = arith.constant 0 : index
    %75 = vector.load %arg7[%c0_49, %c3, %c0_50, %c0_51] : memref<1x4x8x8xf32, #tpu.memory_space<vmem>>, vector<1x1x8x8xf32>
    %76 = vector.shape_cast %75 : vector<1x1x8x8xf32> to vector<8x8xf32>
    %77 = vector.shape_cast %74 : vector<8x8xf32> to vector<1x1x8x8xf32>
    tpu.vector_store %arg7[%c0_49, %c3, %c0_50, %c0_51], %77 {strides = array<i32>} : memref<1x4x8x8xf32, #tpu.memory_space<vmem>>, vector<1x1x8x8xf32>,
    %78 = vector.extract_strided_slice %37 {offsets = [0, 56], sizes = [8, 8], strides = [1, 1]} : vector<8x96xf32> to vector<8x8xf32>
    %c0_52 = arith.constant 0 : index
    %c3_53 = arith.constant 3 : index
    %c0_54 = arith.constant 0 : index
    %c0_55 = arith.constant 0 : index
    %79 = vector.load %arg8[%c0_52, %c3_53, %c0_54, %c0_55] : memref<1x4x8x8xf32, #tpu.memory_space<vmem>>, vector<1x1x8x8xf32>
    %80 = vector.shape_cast %79 : vector<1x1x8x8xf32> to vector<8x8xf32>
    %81 = vector.shape_cast %78 : vector<8x8xf32> to vector<1x1x8x8xf32>
    tpu.vector_store %arg8[%c0_52, %c3_53, %c0_54, %c0_55], %81 {strides = array<i32>} : memref<1x4x8x8xf32, #tpu.memory_space<vmem>>, vector<1x1x8x8xf32>,
    %82 = vector.extract_strided_slice %37 {offsets = [0, 88], sizes = [8, 8], strides = [1, 1]} : vector<8x96xf32> to vector<8x8xf32>
    %c0_56 = arith.constant 0 : index
    %c3_57 = arith.constant 3 : index
    %c0_58 = arith.constant 0 : index
    %c0_59 = arith.constant 0 : index
    %83 = vector.load %arg9[%c0_56, %c3_57, %c0_58, %c0_59] : memref<1x4x8x8xf32, #tpu.memory_space<vmem>>, vector<1x1x8x8xf32>
    %84 = vector.shape_cast %83 : vector<1x1x8x8xf32> to vector<8x8xf32>
    %85 = vector.shape_cast %82 : vector<8x8xf32> to vector<1x1x8x8xf32>
    tpu.vector_store %arg9[%c0_56, %c3_57, %c0_58, %c0_59], %85 {strides = array<i32>} : memref<1x4x8x8xf32, #tpu.memory_space<vmem>>, vector<1x1x8x8xf32>,
    return
  }
  func.func @transform_0(%arg0: i32, %arg1: i32) -> (i32, i32, i32) {
    %c0_i32 = arith.constant 0 : i32
    %c0_i32_0 = arith.constant 0 : i32
    return %arg0, %arg1, %c0_i32 : i32, i32, i32
  }
  func.func @transform_1(%arg0: i32, %arg1: i32) -> (i32, i32) {
    %c0_i32 = arith.constant 0 : i32
    %c0_i32_0 = arith.constant 0 : i32
    %c0_i32_1 = arith.constant 0 : i32
    return %c0_i32, %c0_i32_0 : i32, i32
  }
  func.func @transform_2(%arg0: i32, %arg1: i32) -> (i32, i32) {
    %c0_i32 = arith.constant 0 : i32
    %c0_i32_0 = arith.constant 0 : i32
    %c0_i32_1 = arith.constant 0 : i32
    return %c0_i32, %c0_i32_0 : i32, i32
  }
  func.func @transform_3(%arg0: i32, %arg1: i32) -> (i32, i32) {
    %c0_i32 = arith.constant 0 : i32
    %c0_i32_0 = arith.constant 0 : i32
    %c0_i32_1 = arith.constant 0 : i32
    return %c0_i32, %c0_i32_0 : i32, i32
  }
  func.func @transform_4(%arg0: i32, %arg1: i32) -> (i32, i32) {
    %c0_i32 = arith.constant 0 : i32
    %c0_i32_0 = arith.constant 0 : i32
    %c0_i32_1 = arith.constant 0 : i32
    return %c0_i32, %c0_i32_0 : i32, i32
  }
  func.func @transform_5(%arg0: i32, %arg1: i32) -> (i32, i32, i32, i32) {
    %c0_i32 = arith.constant 0 : i32
    %c0_i32_0 = arith.constant 0 : i32
    %c0_i32_1 = arith.constant 0 : i32
    return %arg0, %c0_i32, %arg1, %c0_i32_0 : i32, i32, i32, i32
  }
  func.func @transform_6(%arg0: i32, %arg1: i32) -> (i32, i32, i32, i32) {
    %c0_i32 = arith.constant 0 : i32
    %c0_i32_0 = arith.constant 0 : i32
    %c0_i32_1 = arith.constant 0 : i32
    return %arg0, %c0_i32, %arg1, %c0_i32_0 : i32, i32, i32, i32
  }
  func.func @transform_7(%arg0: i32, %arg1: i32) -> (i32, i32, i32, i32) {
    %c0_i32 = arith.constant 0 : i32
    %c0_i32_0 = arith.constant 0 : i32
    %c0_i32_1 = arith.constant 0 : i32
    return %arg0, %c0_i32, %arg1, %c0_i32_0 : i32, i32, i32, i32
  }
}

</mosaic_0001>

<llo_original>
// kernel: tpu_custom_call.1
$region0: #{tpu_custom_call.1}
  #allocation0 [shape = 'u32[]', space=smem, size = 0x4, offset = 0x4, fixed_abs, tag = 'smem constant byte address 0x4 - core index']
  #allocation1 [shape = 'u32[144,128]{1,0:T(1,128)}', space=vmem, size = 0x12000, scoped, tag = 'internal scratch']
  %s0 = inlined_call_operand.hbm [shape: f32[2,8,32], index: 0, kind: input, shape index: {}]
  %s1 = inlined_call_operand.vmem [shape: f32[1,32], index: 1, kind: input, shape index: {}]
  %s2 = inlined_call_operand.vmem [shape: f32[1,32], index: 2, kind: input, shape index: {}]
  %s3 = inlined_call_operand.hbm [shape: f32[32,96], index: 3, kind: input, shape index: {}]
  %s4 = inlined_call_operand.vmem [shape: f32[1,96], index: 4, kind: input, shape index: {}]
  %s5 = inlined_call_operand.hbm [shape: f32[2,4,8,8], index: 5, kind: output, shape index: {0}]
  %s6 = inlined_call_operand.hbm [shape: f32[2,4,8,8], index: 6, kind: output, shape index: {1}]
  %s7 = inlined_call_operand.hbm [shape: f32[2,4,8,8], index: 7, kind: output, shape index: {2}]
  %8 = xla_tuple %s5, %s6, %s7
  %s9 = sld [smem:[#allocation0]]
  $region77: #{tpu_custom_call.1} parent=0
    _
  %s11 = ssub.s32 1, %s9
  %s12 = scalar_select 0, %s11, %s9
  $region1: #{tpu_custom_call.1} parent=0
    #allocation2 [shape = 'u8[8192]{0}', space=vmem, size = 0x2000, scoped, tag = 'input window, operand 0']
    #allocation3 [shape = 's32[2]{0}', space=sflag, size = 0x8, scoped, tag = 'scoped memory for tpu_custom_call.1']
    #allocation4 [shape = 's32[2]{0}', space=sflag, size = 0x8, scoped, tag = 'scoped memory for tpu_custom_call.1']
    #allocation5 [shape = 'u8[16384]{0}', space=vmem, size = 0x4000, scoped, tag = 'input window, operand 3, single buffered']
    #allocation6 [shape = 's32[1]{0}', space=sflag, size = 0x4, scoped, tag = 'scoped memory for tpu_custom_call.1']
    #allocation7 [shape = 'u8[32768]{0}', space=vmem, size = 0x8000, scoped, tag = 'output window, operand 0']
    #allocation8 [shape = 'u8[32768]{0}', space=vmem, size = 0x8000, scoped, tag = 'output window, operand 1']
    #allocation9 [shape = 's32[2]{0}', space=sflag, size = 0x8, scoped, tag = 'scoped memory for tpu_custom_call.1']
    #allocation10 [shape = 'u8[32768]{0}', space=vmem, size = 0x8000, scoped, tag = 'output window, operand 2']
    %13 = vsyncpa [#allocation3], 0
    %s14 = scalar_lea.sflag [#allocation3], 1
    %15 = vsyncpa %s14, 0
    %16 = vsyncpa [#allocation6], 0
    %17 = vsyncpa [#allocation4], 0
    %s18 = scalar_lea.sflag [#allocation4], 1
    %19 = vsyncpa %s18, 0
    %20 = vsyncpa [#allocation9], 0
    %s21 = scalar_lea.sflag [#allocation9], 1
    %22 = vsyncpa %s21, 0
    loop: start=0, step=1, limit=4
    $region2: #{tpu_custom_call.1} parent=1 // loop_pre_header
      _
    $region3: #{tpu_custom_call.1} parent=1 // loop_header
      %s24 = sphi 0, %s28
      %p25 = scmp.ge.s32.totalorder %s24, 4
      %s31 = sphi 0, %s43
      %s32 = sphi 0, %s39
      %s33 = sphi 0, %s31
      %s34 = sphi 0, %s32
      %s35 = sphi 0, %s33
      %s36 = sphi 0, %s34
      %s48 = sphi 0, %s50
      %s51 = sphi 0, %s48
      %s52 = sphi 0, %s51
      %s68 = sphi 0, %s52
      %s72 = sphi 0, %s72
      %s74 = sphi 0, %s72
      %s75 = sphi 0, %s74
      %s89 = sphi 0, %s75
      %s93 = sphi 0, %s93
      %s95 = sphi 0, %s93
      %s96 = sphi 0, %s95
      %s110 = sphi 0, %s96
      %s114 = sphi 0, %s114
      %s116 = sphi 0, %s114
      %s117 = sphi 0, %s116
      %s131 = sphi 0, %s117
      %s135 = sphi 0, %s135
      %s137 = sphi 0, %s135
      %s138 = sphi 0, %s137
      %s152 = sphi 0, %s138
      %s160 = sphi 0, %s162
      %s163 = sphi 0, %s160
      %s164 = sphi 0, %s163
      %s180 = sphi 0, %s164
      %s188 = sphi 0, %s190
      %s191 = sphi 0, %s188
      %s192 = sphi 0, %s191
      %s208 = sphi 0, %s192
      %s216 = sphi 0, %s218
      %s219 = sphi 0, %s216
      %s220 = sphi 0, %s219
      %s236 = sphi 0, %s220
    $region4: #{tpu_custom_call.1} parent=1 // loop_header_branch
      %27 = sbr.rel (%p25) target = $region8
    $region5: #{tpu_custom_call.1} parent=1 // loop_body
      %s29 = ssub.s32 %s24, 1
      %s30 = ssub.s32 %s24, 2
      %s37 = sadd.s32 1, %s32
      %p38 = scmp.ge.s32.totalorder %s37, 1
      %s39 = scalar_select %p38, 0, %s37
      %s40 = sadd.s32 1, %s31
      %s41 = scalar_select %p38, %s40, %s31
      %p42 = scmp.ge.s32.totalorder %s41, 2
      %s43 = scalar_select %p42, 0, %s41
      %s44 = ssub.s32 %s31, %s43
      %s45 = ssub.s32 %s32, %s39
      %s46 = sor.u32 %s44, %s45
      %p47 = scmp.eq.s32.totalorder %s46, 0
      %s49 = sadd.s32 %s48, 1
      %s50 = scalar_select %p47, %s48, %s49
      %p53 = pneg %p47
      %p54 = scmp.eq.s32.totalorder %s24, 1
      %p55 = por %p53, %p54
      %p56 = scmp.ne.s32.totalorder %s48, %s51
      %p57 = scmp.eq.s32.totalorder %s24, 0
      %p58 = por %p56, %p57
      %p59 = scmp.ne.s32.totalorder %s48, %s51
      %p60 = scmp.eq.s32.totalorder %s29, 1
      %p61 = por %p59, %p60
      %p62 = scmp.ne.s32.totalorder %s51, %s52
      %p63 = scmp.eq.s32.totalorder %s29, 0
      %p64 = por %p62, %p63
      %p65 = scmp.ne.s32.totalorder %s51, %s52
      %p66 = scmp.eq.s32.totalorder %s30, 1
      %p67 = por %p65, %p66
      %p69 = scmp.ne.s32.totalorder %s52, %s68
      %p70 = scmp.eq.s32.totalorder %s30, 0
      %p71 = por %p69, %p70
      %s73 = sadd.s32 %s72, 1
      %p76 = scmp.eq.s32.totalorder %s24, 1
      %p77 = scmp.ne.s32.totalorder %s72, %s74
      %p78 = scmp.eq.s32.totalorder %s24, 0
      %p79 = por %p77, %p78
      %p80 = scmp.ne.s32.totalorder %s72, %s74
      %p81 = scmp.eq.s32.totalorder %s29, 1
      %p82 = por %p80, %p81
      %p83 = scmp.ne.s32.totalorder %s74, %s75
      %p84 = scmp.eq.s32.totalorder %s29, 0
      %p85 = por %p83, %p84
      %p86 = scmp.ne.s32.totalorder %s74, %s75
      %p87 = scmp.eq.s32.totalorder %s30, 1
      %p88 = por %p86, %p87
      %p90 = scmp.ne.s32.totalorder %s75, %s89
      %p91 = scmp.eq.s32.totalorder %s30, 0
      %p92 = por %p90, %p91
      %s94 = sadd.s32 %s93, 1
      %p97 = scmp.eq.s32.totalorder %s24, 1
      %p98 = scmp.ne.s32.totalorder %s93, %s95
      %p99 = scmp.eq.s32.totalorder %s24, 0
      %p100 = por %p98, %p99
      %p101 = scmp.ne.s32.totalorder %s93, %s95
      %p102 = scmp.eq.s32.totalorder %s29, 1
      %p103 = por %p101, %p102
      %p104 = scmp.ne.s32.totalorder %s95, %s96
      %p105 = scmp.eq.s32.totalorder %s29, 0
      %p106 = por %p104, %p105
      %p107 = scmp.ne.s32.totalorder %s95, %s96
      %p108 = scmp.eq.s32.totalorder %s30, 1
      %p109 = por %p107, %p108
      %p111 = scmp.ne.s32.totalorder %s96, %s110
      %p112 = scmp.eq.s32.totalorder %s30, 0
      %p113 = por %p111, %p112
      %s115 = sadd.s32 %s114, 1
      %p118 = scmp.eq.s32.totalorder %s24, 1
      %p119 = scmp.ne.s32.totalorder %s114, %s116
      %p120 = scmp.eq.s32.totalorder %s24, 0
      %p121 = por %p119, %p120
      %p122 = scmp.ne.s32.totalorder %s114, %s116
      %p123 = scmp.eq.s32.totalorder %s29, 1
      %p124 = por %p122, %p123
      %p125 = scmp.ne.s32.totalorder %s116, %s117
      %p126 = scmp.eq.s32.totalorder %s29, 0
      %p127 = por %p125, %p126
      %p128 = scmp.ne.s32.totalorder %s116, %s117
      %p129 = scmp.eq.s32.totalorder %s30, 1
      %p130 = por %p128, %p129
      %p132 = scmp.ne.s32.totalorder %s117, %s131
      %p133 = scmp.eq.s32.totalorder %s30, 0
      %p134 = por %p132, %p133
      %s136 = sadd.s32 %s135, 1
      %p139 = scmp.eq.s32.totalorder %s24, 1
      %p140 = scmp.ne.s32.totalorder %s135, %s137
      %p141 = scmp.eq.s32.totalorder %s24, 0
      %p142 = por %p140, %p141
      %p143 = scmp.ne.s32.totalorder %s135, %s137
      %p144 = scmp.eq.s32.totalorder %s29, 1
      %p145 = por %p143, %p144
      %p146 = scmp.ne.s32.totalorder %s137, %s138
      %p147 = scmp.eq.s32.totalorder %s29, 0
      %p148 = por %p146, %p147
      %p149 = scmp.ne.s32.totalorder %s137, %s138
      %p150 = scmp.eq.s32.totalorder %s30, 1
      %p151 = por %p149, %p150
      %p153 = scmp.ne.s32.totalorder %s138, %s152
      %p154 = scmp.eq.s32.totalorder %s30, 0
      %p155 = por %p153, %p154
      %s156 = ssub.s32 %s31, %s43
      %s157 = ssub.s32 %s32, %s39
      %s158 = sor.u32 %s156, %s157
      %p159 = scmp.eq.s32.totalorder %s158, 0
      %s161 = sadd.s32 %s160, 1
      %s162 = scalar_select %p159, %s160, %s161
      %p165 = pneg %p159
      %p166 = scmp.eq.s32.totalorder %s24, 1
      %p167 = por %p165, %p166
      %p168 = scmp.ne.s32.totalorder %s160, %s163
      %p169 = scmp.eq.s32.totalorder %s24, 0
      %p170 = por %p168, %p169
      %p171 = scmp.ne.s32.totalorder %s160, %s163
      %p172 = scmp.eq.s32.totalorder %s29, 1
      %p173 = por %p171, %p172
      %p174 = scmp.ne.s32.totalorder %s163, %s164
      %p175 = scmp.eq.s32.totalorder %s29, 0
      %p176 = por %p174, %p175
      %p177 = scmp.ne.s32.totalorder %s163, %s164
      %p178 = scmp.eq.s32.totalorder %s30, 1
      %p179 = por %p177, %p178
      %p181 = scmp.ne.s32.totalorder %s164, %s180
      %p182 = scmp.eq.s32.totalorder %s30, 0
      %p183 = por %p181, %p182
      %s184 = ssub.s32 %s31, %s43
      %s185 = ssub.s32 %s32, %s39
      %s186 = sor.u32 %s184, %s185
      %p187 = scmp.eq.s32.totalorder %s186, 0
      %s189 = sadd.s32 %s188, 1
      %s190 = scalar_select %p187, %s188, %s189
      %p193 = pneg %p187
      %p194 = scmp.eq.s32.totalorder %s24, 1
      %p195 = por %p193, %p194
      %p196 = scmp.ne.s32.totalorder %s188, %s191
      %p197 = scmp.eq.s32.totalorder %s24, 0
      %p198 = por %p196, %p197
      %p199 = scmp.ne.s32.totalorder %s188, %s191
      %p200 = scmp.eq.s32.totalorder %s29, 1
      %p201 = por %p199, %p200
      %p202 = scmp.ne.s32.totalorder %s191, %s192
      %p203 = scmp.eq.s32.totalorder %s29, 0
      %p204 = por %p202, %p203
      %p205 = scmp.ne.s32.totalorder %s191, %s192
      %p206 = scmp.eq.s32.totalorder %s30, 1
      %p207 = por %p205, %p206
      %p209 = scmp.ne.s32.totalorder %s192, %s208
      %p210 = scmp.eq.s32.totalorder %s30, 0
      %p211 = por %p209, %p210
      %s212 = ssub.s32 %s31, %s43
      %s213 = ssub.s32 %s32, %s39
      %s214 = sor.u32 %s212, %s213
      %p215 = scmp.eq.s32.totalorder %s214, 0
      %s217 = sadd.s32 %s216, 1
      %s218 = scalar_select %p215, %s216, %s217
      %p221 = pneg %p215
      %p222 = scmp.eq.s32.totalorder %s24, 1
      %p223 = por %p221, %p222
      %p224 = scmp.ne.s32.totalorder %s216, %s219
      %p225 = scmp.eq.s32.totalorder %s24, 0
      %p226 = por %p224, %p225
      %p227 = scmp.ne.s32.totalorder %s216, %s219
      %p228 = scmp.eq.s32.totalorder %s29, 1
      %p229 = por %p227, %p228
      %p230 = scmp.ne.s32.totalorder %s219, %s220
      %p231 = scmp.eq.s32.totalorder %s29, 0
      %p232 = por %p230, %p231
      %p233 = scmp.ne.s32.totalorder %s219, %s220
      %p234 = scmp.eq.s32.totalorder %s30, 1
      %p235 = por %p233, %p234
      %p237 = scmp.ne.s32.totalorder %s220, %s236
      %p238 = scmp.eq.s32.totalorder %s30, 0
      %p239 = por %p237, %p238
      %p240 = scmp.le.s32.totalorder 1, %s24
      %p241 = scmp.lt.s32.totalorder %s24, 3
      %p242 = pnand %p240, %p241
      %p243 = pneg %p242
      // Predicated region
      $region9: #{tpu_custom_call.1} parent=5 // pred_check
        _
      $region10: #{tpu_custom_call.1} parent=5 // pred_check_branch
        %245 = sbr.rel (%p242) target = $region12
      $region11: #{tpu_custom_call.1} parent=5 // pred_region
        %s246 = ssub.s32 %s24, 1
        // Predicated region
        $region13: #{tpu_custom_call.1} parent=11 // pred_check
          %p247 = pneg %p85
        $region14: #{tpu_custom_call.1} parent=11 // pred_check_branch
          %249 = sbr.rel (%p247) target = $region16
        $region15: #{tpu_custom_call.1} parent=11 // pred_region
          _
        $region16: #{tpu_custom_call.1} parent=11 // pred_fallthru
          _
        // Predicated region
        $region17: #{tpu_custom_call.1} parent=11 // pred_check
          %p250 = pneg %p106
        $region18: #{tpu_custom_call.1} parent=11 // pred_check_branch
          %252 = sbr.rel (%p250) target = $region20
        $region19: #{tpu_custom_call.1} parent=11 // pred_region
          _
        $region20: #{tpu_custom_call.1} parent=11 // pred_fallthru
          _
        // Predicated region
        $region21: #{tpu_custom_call.1} parent=11 // pred_check
          %p253 = pneg %p127
        $region22: #{tpu_custom_call.1} parent=11 // pred_check_branch
          %255 = sbr.rel (%p253) target = $region24
        $region23: #{tpu_custom_call.1} parent=11 // pred_region
          %s257 = ssub.s32 512, 512
          %258 = vsyncadd [#allocation6], %s257
          %s259 = sshll.u32 [#allocation5], 4
          %s260 = int_to_ptr.vmem [resolvable:$true] %s259
          %265 = dma.hbm_to_vmem [thread:$0]  %s3, 512, %s260, [#allocation6], 128, 128, 8
        $region24: #{tpu_custom_call.1} parent=11 // pred_fallthru
          _
        // Predicated region
        $region25: #{tpu_custom_call.1} parent=11 // pred_check
          %p266 = pneg %p148
        $region26: #{tpu_custom_call.1} parent=11 // pred_check_branch
          %268 = sbr.rel (%p266) target = $region28
        $region27: #{tpu_custom_call.1} parent=11 // pred_region
          _
        $region28: #{tpu_custom_call.1} parent=11 // pred_fallthru
          _
      $region12: #{tpu_custom_call.1} parent=5 // pred_fallthru
        _
      %p269 = scmp.lt.s32.totalorder %s24, 2
      // Predicated region
      $region29: #{tpu_custom_call.1} parent=5 // pred_check
        %p270 = pneg %p269
      $region30: #{tpu_custom_call.1} parent=5 // pred_check_branch
        %272 = sbr.rel (%p270) target = $region32
      $region31: #{tpu_custom_call.1} parent=5 // pred_region
        // Predicated region
        $region33: #{tpu_custom_call.1} parent=31 // pred_check
          %p273 = pneg %p58
        $region34: #{tpu_custom_call.1} parent=31 // pred_check_branch
          %275 = sbr.rel (%p273) target = $region36
        $region35: #{tpu_custom_call.1} parent=31 // pred_region
          %s276 = sand.u32 %s48, 1
          %s277 = scalar_lea.sflag [#allocation3], %s276
          %s278 = sand.u32 %s48, 1
          %s279 = smul.addr %s278, 8
          %s280 = scalar_lea.vmem [#allocation2], %s279
          %s282 = ssub.s32 128, 128
          %283 = vsyncadd %s277, %s282
          %s284 = sadd.s32 %s32, %s31
          %s285 = smul.addr %s284, 128
          %s286 = scalar_lea.hbm %s0, %s285
          %s288 = sshll.u32 %s280, 4
          %s289 = int_to_ptr.vmem [resolvable:$true] %s288
          %291 = dma.hbm_to_vmem [thread:$0]  %s286, 128, %s289, %s277
        $region36: #{tpu_custom_call.1} parent=31 // pred_fallthru
          _
      $region32: #{tpu_custom_call.1} parent=5 // pred_fallthru
        _
      %p292 = scmp.le.s32.totalorder 1, %s24
      %p293 = scmp.lt.s32.totalorder %s24, 3
      %p294 = pnand %p292, %p293
      %p295 = pneg %p294
      // Predicated region
      $region37: #{tpu_custom_call.1} parent=5 // pred_check
        _
      $region38: #{tpu_custom_call.1} parent=5 // pred_check_branch
        %297 = sbr.rel (%p294) target = $region40
      $region39: #{tpu_custom_call.1} parent=5 // pred_region
        %s298 = ssub.s32 %s24, 1
        %s299 = sand.u32 %s51, 1
        %s300 = scalar_lea.sflag [#allocation3], %s299
        %s301 = sand.u32 %s51, 1
        %s302 = smul.addr %s301, 8
        %s303 = scalar_lea.vmem [#allocation2], %s302
        // Predicated region
        $region41: #{tpu_custom_call.1} parent=39 // pred_check
          %p304 = pneg %p64
        $region42: #{tpu_custom_call.1} parent=39 // pred_check_branch
          %306 = sbr.rel (%p304) target = $region44
        $region43: #{tpu_custom_call.1} parent=39 // pred_region
          %307 = dma.done %s300, 128
        $region44: #{tpu_custom_call.1} parent=39 // pred_fallthru
          _
        // Predicated region
        $region45: #{tpu_custom_call.1} parent=39 // pred_check
          %p308 = pneg %p127
        $region46: #{tpu_custom_call.1} parent=39 // pred_check_branch
          %310 = sbr.rel (%p308) target = $region48
        $region47: #{tpu_custom_call.1} parent=39 // pred_region
          %311 = dma.done [#allocation6], 512
        $region48: #{tpu_custom_call.1} parent=39 // pred_fallthru
          _
        %s312 = sand.u32 %s51, 1
        %s313 = scalar_lea.sflag [#allocation3], %s312
        %s314 = sand.u32 %s51, 1
        %s315 = smul.addr %s314, 8
        %s316 = scalar_lea.vmem [#allocation2], %s315
        %p317 = pneg %p64
        %p318 = pneg %p61
        %p319 = pneg %p85
        %p320 = pneg %p82
        %p321 = pneg %p106
        %p322 = pneg %p103
        %p323 = pneg %p127
        %p324 = pneg %p124
        %p325 = pneg %p148
        %p326 = pneg %p145
        %p327 = pneg %p176
        %p328 = pneg %p173
        %s329 = sand.u32 %s163, 1
        %s330 = scalar_lea.sflag [#allocation4], %s329
        %s331 = sand.u32 %s163, 1
        %s332 = smul.addr %s331, 32
        %s333 = scalar_lea.vmem [#allocation7], %s332
        %p334 = pneg %p204
        %p335 = pneg %p201
        %s336 = sand.u32 %s29, 1
        %s337 = scalar_lea.sflag [#allocation9], %s336
        %s338 = sand.u32 %s191, 1
        %s339 = smul.addr %s338, 32
        %s340 = scalar_lea.vmem [#allocation8], %s339
        %p341 = pneg %p232
        %p342 = pneg %p229
        %s343 = sand.u32 %s29, 1
        %s344 = scalar_lea.sflag [#allocation9], %s343
        %s345 = sand.u32 %s219, 1
        %s346 = smul.addr %s345, 32
        %s347 = scalar_lea.vmem [#allocation10], %s346
        %v348 = vld [vmem:[%s303] sm:$0xff]
        %v349 = vld [vmem:[%s1] sm:$0x1]
        %v350 = vld [vmem:[%s2] sm:$0x1]
        %vm351 = vcmask 261120
        %v352 = vsel %vm351, %v348, 0.0
        %353 = vadd.xlane.f32.xlu0 %v352
        %v354 = vpop.xlane.xlu0 %353
        %v355 = vrcp.pop 32.0
        %v356 = vmul.f32 %v354, %v355
        %v357 = vsub.f32 %v348, %v356
        %v358 = vmul.f32 %v357, %v357
        %v359 = vsel %vm351, %v358, 0.0
        %360 = vadd.xlane.f32.xlu0 %v359
        %v361 = vpop.xlane.xlu0 %360
        %v362 = vmul.f32 %v361, 0.032258064
        %v363 = vrsqrt.pop %v362
        %v364 = vmul.f32 %v362, %v363
        %vm365 = vcmp.eq.f32.partialorder %v362, inf
        %v366 = vsel %vm365, %v362, %v364
        %vm367 = vcmp.eq.f32.partialorder %v362, 0.0
        %v368 = vand.u32 %v362, 2147483648
        %v369 = vsel %vm367, %v368, %v366
        %v370 = vadd.f32 %v369, 1e-06
        %v371 = vrcp.pop %v370
        %v373 = vlaneseq
        %v374 = vshrl.u32 %v373, 7
        %v375 = vsub.s32 0, %v374
        %v376 = vrot.slane %v349, %v375
        %v378 = vmul.f32 %v376, %v357
        %v379 = vmul.f32 %v378, %v371
        %v381 = vlaneseq
        %v382 = vshrl.u32 %v381, 7
        %v383 = vsub.s32 0, %v382
        %v384 = vrot.slane %v350, %v383
        %v386 = vadd.f32 %v379, %v384
        %v387 = vld [vmem:[#allocation5] sm:$0xff]
        %v388 = vld [vmem:[#allocation5 + $0x8] sm:$0xff]
        %v389 = vld [vmem:[#allocation5 + $0x10] sm:$0xff]
        %v390 = vld [vmem:[#allocation5 + $0x18] sm:$0xff]
        %v391 = vld [vmem:[%s4] sm:$0x1]
        %v393 = vlaneseq
        %v394 = vshrl.u32 %v393, 7
        %v395 = vsub.s32 0, %v394
        %v396 = vrot.slane %v391, %v395
        %v399 = vsel %vm351, %v386, 0
        %401 = vmatprep.subr.mxu0 0.0
        %402 = vmatpush1.msra.mxu0 %v387
        %403 = vmatprep.subr.mxu0 0.0
        %404 = vmatpush1.msra.mxu0 %v388
        %405 = vmatprep.subr.mxu0 0.0
        %406 = vmatpush1.msra.mxu0 %v389
        %407 = vmatprep.subr.mxu0 0.0
        %408 = vmatpush1.msra.mxu0 %v390
        %409 = vmatprep.subr.mxu0 0.0
        %410 = vmatpush1.msra.mxu0 0.0
        %411 = vmatprep.subr.mxu0 0.0
        %412 = vmatpush1.msra.mxu0 0.0
        %413 = vmatprep.subr.mxu0 0.0
        %414 = vmatpush1.msra.mxu0 0.0
        %415 = vmatprep.subr.mxu0 0.0
        %416 = vmatpush1.msra.mxu0 0.0
        %417 = vmatprep.subr.mxu0 0.0
        %418 = vmatpush1.msra.mxu0 0.0
        %419 = vmatprep.subr.mxu0 0.0
        %420 = vmatpush1.msra.mxu0 0.0
        %421 = vmatprep.subr.mxu0 0.0
        %422 = vmatpush1.msra.mxu0 0.0
        %423 = vmatprep.subr.mxu0 0.0
        %424 = vmatpush1.msra.mxu0 0.0
        %425 = vmatprep.subr.mxu0 0.0
        %426 = vmatpush1.msra.mxu0 0.0
        %427 = vmatprep.subr.mxu0 0.0
        %428 = vmatpush1.msra.mxu0 0.0
        %429 = vmatprep.subr.mxu0 0.0
        %430 = vmatpush1.msra.mxu0 0.0
        %431 = vmatprep.subr.mxu0 0.0
        %432 = vmatpush1.msra.mxu0 0.0
        %433 = vmatprep.subr.mxu0 0.0
        %434 = vmatpush1.msra.mxu0 0.0
        %435 = vmatprep.subr.mxu0 0.0
        %436 = vmatpush1.msra.mxu0 0.0
        %437 = vmatprep.subr.mxu0 0.0
        %438 = vmatpush1.msra.mxu0 0.0
        %439 = vmatprep.subr.mxu0 0.0
        %440 = vmatpush1.msra.mxu0 0.0
        %441 = vmatprep.subr.mxu0 0.0
        %442 = vmatpush1.msra.mxu0 0.0
        %443 = vmatprep.subr.mxu0 0.0
        %444 = vmatpush1.msra.mxu0 0.0
        %445 = vmatprep.subr.mxu0 0.0
        %446 = vmatpush1.msra.mxu0 0.0
        %447 = vmatprep.subr.mxu0 0.0
        %448 = vmatpush1.msra.mxu0 0.0
        %449 = vmatprep.subr.mxu0 0.0
        %450 = vmatpush1.msra.mxu0 0.0
        %451 = vmatprep.subr.mxu0 0.0
        %452 = vmatpush1.msra.mxu0 0.0
        %453 = vmatprep.subr.mxu0 0.0
        %454 = vmatpush1.msra.mxu0 0.0
        %455 = vmatprep.subr.mxu0 0.0
        %456 = vmatpush1.msra.mxu0 0.0
        %457 = vmatprep.subr.mxu0 0.0
        %458 = vmatpush1.msra.mxu0 0.0
        %459 = vmatprep.subr.mxu0 0.0
        %460 = vmatpush1.msra.mxu0 0.0
        %461 = vmatprep.subr.mxu0 0.0
        %462 = vmatpush1.msra.mxu0 0.0
        %463 = vmatprep.subr.mxu0 0.0
        %464 = vmatpush1.msra.mxu0 0.0
        %465 = vmatprep.mubr.f32.mxu0 0.0
        %466 = vmatmul.mubr.f32.gmra.mrb[0].mxu0 %v399
        %v467 = vpop.f32.mrb[0].mxu0
        %v468 = vadd.f32 %v396, %v467
        %v469 = vpop.f32.mrb[0].mxu0
        %470 = vdwg.mxu0
        %vm471 = vcmask 64512
        %472 = vst.msk [vmem:[%s333] sm:$0xff] %vm471, %v468
        %474 = vrot.lane.b32.xlu0 %v468, 96
        %v475 = vpop.permute.xlu0 %474
        %477 = vst.msk [vmem:[%s340] sm:$0xff] %vm471, %v475
        %478 = vrot.lane.b32.xlu0 %v468, 64
        %v479 = vpop.permute.xlu0 %478
        %481 = vst.msk [vmem:[%s347] sm:$0xff] %vm471, %v479
        %482 = vrot.lane.b32.xlu0 %v468, 120
        %v483 = vpop.permute.xlu0 %482
        %s485 = scalar_lea.vmem %s333, 8 [#allocation7]
        %486 = vst.msk [vmem:[%s485] sm:$0xff] %vm471, %v483
        %487 = vrot.lane.b32.xlu0 %v468, 88
        %v488 = vpop.permute.xlu0 %487
        %s490 = scalar_lea.vmem %s340, 8 [#allocation8]
        %491 = vst.msk [vmem:[%s490] sm:$0xff] %vm471, %v488
        %492 = vrot.lane.b32.xlu0 %v468, 56
        %v493 = vpop.permute.xlu0 %492
        %s495 = scalar_lea.vmem %s347, 8 [#allocation10]
        %496 = vst.msk [vmem:[%s495] sm:$0xff] %vm471, %v493
        %497 = vrot.lane.b32.xlu0 %v468, 112
        %v498 = vpop.permute.xlu0 %497
        %s500 = scalar_lea.vmem %s333, 16 [#allocation7]
        %501 = vst.msk [vmem:[%s500] sm:$0xff] %vm471, %v498
        %502 = vrot.lane.b32.xlu0 %v468, 80
        %v503 = vpop.permute.xlu0 %502
        %s505 = scalar_lea.vmem %s340, 16 [#allocation8]
        %506 = vst.msk [vmem:[%s505] sm:$0xff] %vm471, %v503
        %507 = vrot.lane.b32.xlu0 %v468, 48
        %v508 = vpop.permute.xlu0 %507
        %s510 = scalar_lea.vmem %s347, 16 [#allocation10]
        %511 = vst.msk [vmem:[%s510] sm:$0xff] %vm471, %v508
        %512 = vrot.lane.b32.xlu0 %v468, 104
        %v513 = vpop.permute.xlu0 %512
        %s515 = scalar_lea.vmem %s333, 24 [#allocation7]
        %516 = vst.msk [vmem:[%s515] sm:$0xff] %vm471, %v513
        %517 = vrot.lane.b32.xlu0 %v468, 72
        %v518 = vpop.permute.xlu0 %517
        %s520 = scalar_lea.vmem %s340, 24 [#allocation8]
        %521 = vst.msk [vmem:[%s520] sm:$0xff] %vm471, %v518
        %522 = vrot.lane.b32.xlu0 %v468, 40
        %v523 = vpop.permute.xlu0 %522
        %s525 = scalar_lea.vmem %s347, 24 [#allocation10]
        %526 = vst.msk [vmem:[%s525] sm:$0xff] %vm471, %v523
        %s527 = sand.u32 %s163, 1
        %s528 = scalar_lea.sflag [#allocation4], %s527
        %s529 = sand.u32 %s163, 1
        %s530 = smul.addr %s529, 32
        %s531 = scalar_lea.vmem [#allocation7], %s530
        %s532 = sand.u32 %s29, 1
        %s533 = scalar_lea.sflag [#allocation9], %s532
        %s534 = sand.u32 %s191, 1
        %s535 = smul.addr %s534, 32
        %s536 = scalar_lea.vmem [#allocation8], %s535
        %s537 = sand.u32 %s29, 1
        %s538 = scalar_lea.sflag [#allocation9], %s537
        %s539 = sand.u32 %s219, 1
        %s540 = smul.addr %s539, 32
        %s541 = scalar_lea.vmem [#allocation10], %s540
        // Predicated region
        $region49: #{tpu_custom_call.1} parent=39 // pred_check
          %p542 = pneg %p173
        $region50: #{tpu_custom_call.1} parent=39 // pred_check_branch
          %544 = sbr.rel (%p542) target = $region52
        $region51: #{tpu_custom_call.1} parent=39 // pred_region
          %s546 = ssub.s32 512, 512
          %547 = vsyncadd %s528, %s546
          %s548 = smul.addr %s33, 4
          %s549 = sadd.s32 %s34, %s548
          %s550 = smul.addr %s549, 128
          %s551 = scalar_lea.hbm %s5, %s550
          %s552 = sshll.u32 %s531, 4
          %s553 = int_to_ptr.vmem [resolvable:$true] %s552
          %558 = dma.vmem_to_hbm [thread:$0]  %s553, 512, %s551, %s528, 128, 128, 8
        $region52: #{tpu_custom_call.1} parent=39 // pred_fallthru
          _
        // Predicated region
        $region53: #{tpu_custom_call.1} parent=39 // pred_check
          %p559 = pneg %p201
        $region54: #{tpu_custom_call.1} parent=39 // pred_check_branch
          %561 = sbr.rel (%p559) target = $region56
        $region55: #{tpu_custom_call.1} parent=39 // pred_region
          %s563 = ssub.s32 512, 512
          %564 = vsyncadd %s533, %s563
          %s565 = smul.addr %s33, 4
          %s566 = sadd.s32 %s34, %s565
          %s567 = smul.addr %s566, 128
          %s568 = scalar_lea.hbm %s6, %s567
          %s569 = sshll.u32 %s536, 4
          %s570 = int_to_ptr.vmem [resolvable:$true] %s569
          %575 = dma.vmem_to_hbm [thread:$0]  %s570, 512, %s568, %s533, 128, 128, 8
        $region56: #{tpu_custom_call.1} parent=39 // pred_fallthru
          _
        // Predicated region
        $region57: #{tpu_custom_call.1} parent=39 // pred_check
          %p576 = pneg %p229
        $region58: #{tpu_custom_call.1} parent=39 // pred_check_branch
          %578 = sbr.rel (%p576) target = $region60
        $region59: #{tpu_custom_call.1} parent=39 // pred_region
          %s580 = ssub.s32 512, 512
          %581 = vsyncadd %s538, %s580
          %s582 = smul.addr %s33, 4
          %s583 = sadd.s32 %s34, %s582
          %s584 = smul.addr %s583, 128
          %s585 = scalar_lea.hbm %s7, %s584
          %s586 = sshll.u32 %s541, 4
          %s587 = int_to_ptr.vmem [resolvable:$true] %s586
          %592 = dma.vmem_to_hbm [thread:$0]  %s587, 512, %s585, %s538, 128, 128, 8
        $region60: #{tpu_custom_call.1} parent=39 // pred_fallthru
          _
      $region40: #{tpu_custom_call.1} parent=5 // pred_fallthru
        _
      %p593 = scmp.le.s32.totalorder 2, %s24
      // Predicated region
      $region61: #{tpu_custom_call.1} parent=5 // pred_check
        %p594 = pneg %p593
      $region62: #{tpu_custom_call.1} parent=5 // pred_check_branch
        %596 = sbr.rel (%p594) target = $region64
      $region63: #{tpu_custom_call.1} parent=5 // pred_region
        %s597 = ssub.s32 %s24, 2
        // Predicated region
        $region65: #{tpu_custom_call.1} parent=63 // pred_check
          %p598 = pneg %p179
        $region66: #{tpu_custom_call.1} parent=63 // pred_check_branch
          %600 = sbr.rel (%p598) target = $region68
        $region67: #{tpu_custom_call.1} parent=63 // pred_region
          %s601 = sand.u32 %s164, 1
          %s602 = scalar_lea.sflag [#allocation4], %s601
          %s603 = sand.u32 %s164, 1
          %s604 = smul.addr %s603, 32
          %s605 = scalar_lea.vmem [#allocation7], %s604
          %606 = dma.done %s602, 512
        $region68: #{tpu_custom_call.1} parent=63 // pred_fallthru
          _
        // Predicated region
        $region69: #{tpu_custom_call.1} parent=63 // pred_check
          %p607 = pneg %p207
        $region70: #{tpu_custom_call.1} parent=63 // pred_check_branch
          %609 = sbr.rel (%p607) target = $region72
        $region71: #{tpu_custom_call.1} parent=63 // pred_region
          %s610 = sand.u32 %s30, 1
          %s611 = scalar_lea.sflag [#allocation9], %s610
          %s612 = sand.u32 %s192, 1
          %s613 = smul.addr %s612, 32
          %s614 = scalar_lea.vmem [#allocation8], %s613
          %615 = dma.done %s611, 512
        $region72: #{tpu_custom_call.1} parent=63 // pred_fallthru
          _
        // Predicated region
        $region73: #{tpu_custom_call.1} parent=63 // pred_check
          %p616 = pneg %p235
        $region74: #{tpu_custom_call.1} parent=63 // pred_check_branch
          %618 = sbr.rel (%p616) target = $region76
        $region75: #{tpu_custom_call.1} parent=63 // pred_region
          %s619 = sand.u32 %s30, 1
          %s620 = scalar_lea.sflag [#allocation9], %s619
          %s621 = sand.u32 %s220, 1
          %s622 = smul.addr %s621, 32
          %s623 = scalar_lea.vmem [#allocation10], %s622
          %624 = dma.done %s620, 512
        $region76: #{tpu_custom_call.1} parent=63 // pred_fallthru
          _
      $region64: #{tpu_custom_call.1} parent=5 // pred_fallthru
        _
    $region6: #{tpu_custom_call.1} parent=1 // loop_footer
      %s28 = sadd.s32 1, %s24
    $region7: #{tpu_custom_call.1} parent=1 // loop_footer_branch
      %23 = sbr.rel target = $region3
    $region8: #{tpu_custom_call.1} parent=1 // loop_exit
      _
    %625 = vsyncpa [#allocation3], 1
    %s626 = scalar_lea.sflag [#allocation3], 1
    %627 = vsyncpa %s626, 1
    %628 = vsyncpa [#allocation6], 1
    %629 = vsyncpa [#allocation4], 1
    %s630 = scalar_lea.sflag [#allocation4], 1
    %631 = vsyncpa %s630, 1
    %632 = vsyncpa [#allocation9], 1
    %s633 = scalar_lea.sflag [#allocation9], 1
    %634 = vsyncpa %s633, 1

// kernel: tpu_custom_call.1
$region0: #{tpu_custom_call.1}
  #allocation0 [shape = 'u32[]', space=smem, size = 0x4, offset = 0x4, fixed_abs, tag = 'smem constant byte address 0x4 - core index']
  #allocation1 [shape = 'u32[144,128]{1,0:T(1,128)}', space=vmem, size = 0x12000, scoped, tag = 'internal scratch']
  %s0 = inlined_call_operand.hbm [shape: f32[2,8,32], index: 0, kind: input, shape index: {}]
  %s1 = inlined_call_operand.vmem [shape: f32[1,32], index: 1, kind: input, shape index: {}]
  %s2 = inlined_call_operand.vmem [shape: f32[1,32], index: 2, kind: input, shape index: {}]
  %s3 = inlined_call_operand.hbm [shape: f32[32,96], index: 3, kind: input, shape index: {}]
  %s4 = inlined_call_operand.vmem [shape: f32[1,96], index: 4, kind: input, shape index: {}]
  %s5 = inlined_call_operand.hbm [shape: f32[2,4,8,8], index: 5, kind: output, shape index: {0}]
  %s6 = inlined_call_operand.hbm [shape: f32[2,4,8,8], index: 6, kind: output, shape index: {1}]
  %s7 = inlined_call_operand.hbm [shape: f32[2,4,8,8], index: 7, kind: output, shape index: {2}]
  %8 = xla_tuple %s5, %s6, %s7
  %s9 = sld [smem:[#allocation0]]
  $region77: #{tpu_custom_call.1} parent=0
    _
  %s11 = ssub.s32 1, %s9
  %s12 = scalar_select 0, %s11, %s9
  $region1: #{tpu_custom_call.1} parent=0
    #allocation2 [shape = 'u8[8192]{0}', space=vmem, size = 0x2000, scoped, tag = 'input window, operand 0']
    #allocation3 [shape = 's32[2]{0}', space=sflag, size = 0x8, scoped, tag = 'scoped memory for tpu_custom_call.1']
    #allocation4 [shape = 's32[2]{0}', space=sflag, size = 0x8, scoped, tag = 'scoped memory for tpu_custom_call.1']
    #allocation5 [shape = 'u8[16384]{0}', space=vmem, size = 0x4000, scoped, tag = 'input window, operand 3, single buffered']
    #allocation6 [shape = 's32[1]{0}', space=sflag, size = 0x4, scoped, tag = 'scoped memory for tpu_custom_call.1']
    #allocation7 [shape = 'u8[32768]{0}', space=vmem, size = 0x8000, scoped, tag = 'output window, operand 0']
    #allocation8 [shape = 'u8[32768]{0}', space=vmem, size = 0x8000, scoped, tag = 'output window, operand 1']
    #allocation9 [shape = 's32[2]{0}', space=sflag, size = 0x8, scoped, tag = 'scoped memory for tpu_custom_call.1']
    #allocation10 [shape = 'u8[32768]{0}', space=vmem, size = 0x8000, scoped, tag = 'output window, operand 2']
    %13 = vsyncpa [#allocation3], 0
    %s14 = scalar_lea.sflag [#allocation3], 1
    %15 = vsyncpa %s14, 0
    %16 = vsyncpa [#allocation6], 0
    %17 = vsyncpa [#allocation4], 0
    %s18 = scalar_lea.sflag [#allocation4], 1
    %19 = vsyncpa %s18, 0
    %20 = vsyncpa [#allocation9], 0
    %s21 = scalar_lea.sflag [#allocation9], 1
    %22 = vsyncpa %s21, 0
    loop: start=0, step=1, limit=4
    $region2: #{tpu_custom_call.1} parent=1 // loop_pre_header
      _
    $region3: #{tpu_custom_call.1} parent=1 // loop_header
      %s24 = sphi 0, %s28
      %p25 = scmp.ge.s32.totalorder %s24, 4
      %s31 = sphi 0, %s43
      %s32 = sphi 0, %s39
      %s33 = sphi 0, %s31
      %s34 = sphi 0, %s32
      %s35 = sphi 0, %s33
      %s36 = sphi 0, %s34
      %s48 = sphi 0, %s50
      %s51 = sphi 0, %s48
      %s52 = sphi 0, %s51
      %s68 = sphi 0, %s52
      %s72 = sphi 0, %s72
      %s74 = sphi 0, %s72
      %s75 = sphi 0, %s74
      %s89 = sphi 0, %s75
      %s93 = sphi 0, %s93
      %s95 = sphi 0, %s93
      %s96 = sphi 0, %s95
      %s110 = sphi 0, %s96
      %s114 = sphi 0, %s114
      %s116 = sphi 0, %s114
      %s117 = sphi 0, %s116
      %s131 = sphi 0, %s117
      %s135 = sphi 0, %s135
      %s137 = sphi 0, %s135
      %s138 = sphi 0, %s137
      %s152 = sphi 0, %s138
      %s160 = sphi 0, %s162
      %s163 = sphi 0, %s160
      %s164 = sphi 0, %s163
      %s180 = sphi 0, %s164
      %s188 = sphi 0, %s190
      %s191 = sphi 0, %s188
      %s192 = sphi 0, %s191
      %s208 = sphi 0, %s192
      %s216 = sphi 0, %s218
      %s219 = sphi 0, %s216
      %s220 = sphi 0, %s219
      %s236 = sphi 0, %s220
    $region4: #{tpu_custom_call.1} parent=1 // loop_header_branch
      %27 = sbr.rel (%p25) target = $region8
    $region5: #{tpu_custom_call.1} parent=1 // loop_body
      %s29 = ssub.s32 %s24, 1
      %s30 = ssub.s32 %s24, 2
      %s37 = sadd.s32 1, %s32
      %p38 = scmp.ge.s32.totalorder %s37, 1
      %s39 = scalar_select %p38, 0, %s37
      %s40 = sadd.s32 1, %s31
      %s41 = scalar_select %p38, %s40, %s31
      %p42 = scmp.ge.s32.totalorder %s41, 2
      %s43 = scalar_select %p42, 0, %s41
      %s44 = ssub.s32 %s31, %s43
      %s45 = ssub.s32 %s32, %s39
      %s46 = sor.u32 %s44, %s45
      %p47 = scmp.eq.s32.totalorder %s46, 0
      %s49 = sadd.s32 %s48, 1
      %s50 = scalar_select %p47, %s48, %s49
      %p53 = pneg %p47
      %p54 = scmp.eq.s32.totalorder %s24, 1
      %p55 = por %p53, %p54
      %p56 = scmp.ne.s32.totalorder %s48, %s51
      %p57 = scmp.eq.s32.totalorder %s24, 0
      %p58 = por %p56, %p57
      %p59 = scmp.ne.s32.totalorder %s48, %s51
      %p60 = scmp.eq.s32.totalorder %s29, 1
      %p61 = por %p59, %p60
      %p62 = scmp.ne.s32.totalorder %s51, %s52
      %p63 = scmp.eq.s32.totalorder %s29, 0
      %p64 = por %p62, %p63
      %p65 = scmp.ne.s32.totalorder %s51, %s52
      %p66 = scmp.eq.s32.totalorder %s30, 1
      %p67 = por %p65, %p66
      %p69 = scmp.ne.s32.totalorder %s52, %s68
      %p70 = scmp.eq.s32.totalorder %s30, 0
      %p71 = por %p69, %p70
      %s73 = sadd.s32 %s72, 1
      %p76 = scmp.eq.s32.totalorder %s24, 1
      %p77 = scmp.ne.s32.totalorder %s72, %s74
      %p78 = scmp.eq.s32.totalorder %s24, 0
      %p79 = por %p77, %p78
      %p80 = scmp.ne.s32.totalorder %s72, %s74
      %p81 = scmp.eq.s32.totalorder %s29, 1
      %p82 = por %p80, %p81
      %p83 = scmp.ne.s32.totalorder %s74, %s75
      %p84 = scmp.eq.s32.totalorder %s29, 0
      %p85 = por %p83, %p84
      %p86 = scmp.ne.s32.totalorder %s74, %s75
      %p87 = scmp.eq.s32.totalorder %s30, 1
      %p88 = por %p86, %p87
      %p90 = scmp.ne.s32.totalorder %s75, %s89
      %p91 = scmp.eq.s32.totalorder %s30, 0
      %p92 = por %p90, %p91
      %s94 = sadd.s32 %s93, 1
      %p97 = scmp.eq.s32.totalorder %s24, 1
      %p98 = scmp.ne.s32.totalorder %s93, %s95
      %p99 = scmp.eq.s32.totalorder %s24, 0
      %p100 = por %p98, %p99
      %p101 = scmp.ne.s32.totalorder %s93, %s95
      %p102 = scmp.eq.s32.totalorder %s29, 1
      %p103 = por %p101, %p102
      %p104 = scmp.ne.s32.totalorder %s95, %s96
      %p105 = scmp.eq.s32.totalorder %s29, 0
      %p106 = por %p104, %p105
      %p107 = scmp.ne.s32.totalorder %s95, %s96
      %p108 = scmp.eq.s32.totalorder %s30, 1
      %p109 = por %p107, %p108
      %p111 = scmp.ne.s32.totalorder %s96, %s110
      %p112 = scmp.eq.s32.totalorder %s30, 0
      %p113 = por %p111, %p112
      %s115 = sadd.s32 %s114, 1
      %p118 = scmp.eq.s32.totalorder %s24, 1
      %p119 = scmp.ne.s32.totalorder %s114, %s116
      %p120 = scmp.eq.s32.totalorder %s24, 0
      %p121 = por %p119, %p120
      %p122 = scmp.ne.s32.totalorder %s114, %s116
      %p123 = scmp.eq.s32.totalorder %s29, 1
      %p124 = por %p122, %p123
      %p125 = scmp.ne.s32.totalorder %s116, %s117
      %p126 = scmp.eq.s32.totalorder %s29, 0
      %p127 = por %p125, %p126
      %p128 = scmp.ne.s32.totalorder %s116, %s117
      %p129 = scmp.eq.s32.totalorder %s30, 1
      %p130 = por %p128, %p129
      %p132 = scmp.ne.s32.totalorder %s117, %s131
      %p133 = scmp.eq.s32.totalorder %s30, 0
      %p134 = por %p132, %p133
      %s136 = sadd.s32 %s135, 1
      %p139 = scmp.eq.s32.totalorder %s24, 1
      %p140 = scmp.ne.s32.totalorder %s135, %s137
      %p141 = scmp.eq.s32.totalorder %s24, 0
      %p142 = por %p140, %p141
      %p143 = scmp.ne.s32.totalorder %s135, %s137
      %p144 = scmp.eq.s32.totalorder %s29, 1
      %p145 = por %p143, %p144
      %p146 = scmp.ne.s32.totalorder %s137, %s138
      %p147 = scmp.eq.s32.totalorder %s29, 0
      %p148 = por %p146, %p147
      %p149 = scmp.ne.s32.totalorder %s137, %s138
      %p150 = scmp.eq.s32.totalorder %s30, 1
      %p151 = por %p149, %p150
      %p153 = scmp.ne.s32.totalorder %s138, %s152
      %p154 = scmp.eq.s32.totalorder %s30, 0
      %p155 = por %p153, %p154
      %s156 = ssub.s32 %s31, %s43
      %s157 = ssub.s32 %s32, %s39
      %s158 = sor.u32 %s156, %s157
      %p159 = scmp.eq.s32.totalorder %s158, 0
      %s161 = sadd.s32 %s160, 1
      %s162 = scalar_select %p159, %s160, %s161
      %p165 = pneg %p159
      %p166 = scmp.eq.s32.totalorder %s24, 1
      %p167 = por %p165, %p166
      %p168 = scmp.ne.s32.totalorder %s160, %s163
      %p169 = scmp.eq.s32.totalorder %s24, 0
      %p170 = por %p168, %p169
      %p171 = scmp.ne.s32.totalorder %s160, %s163
      %p172 = scmp.eq.s32.totalorder %s29, 1
      %p173 = por %p171, %p172
      %p174 = scmp.ne.s32.totalorder %s163, %s164
      %p175 = scmp.eq.s32.totalorder %s29, 0
      %p176 = por %p174, %p175
      %p177 = scmp.ne.s32.totalorder %s163, %s164
      %p178 = scmp.eq.s32.totalorder %s30, 1
      %p179 = por %p177, %p178
      %p181 = scmp.ne.s32.totalorder %s164, %s180
      %p182 = scmp.eq.s32.totalorder %s30, 0
      %p183 = por %p181, %p182
      %s184 = ssub.s32 %s31, %s43
      %s185 = ssub.s32 %s32, %s39
      %s186 = sor.u32 %s184, %s185
      %p187 = scmp.eq.s32.totalorder %s186, 0
      %s189 = sadd.s32 %s188, 1
      %s190 = scalar_select %p187, %s188, %s189
      %p193 = pneg %p187
      %p194 = scmp.eq.s32.totalorder %s24, 1
      %p195 = por %p193, %p194
      %p196 = scmp.ne.s32.totalorder %s188, %s191
      %p197 = scmp.eq.s32.totalorder %s24, 0
      %p198 = por %p196, %p197
      %p199 = scmp.ne.s32.totalorder %s188, %s191
      %p200 = scmp.eq.s32.totalorder %s29, 1
      %p201 = por %p199, %p200
      %p202 = scmp.ne.s32.totalorder %s191, %s192
      %p203 = scmp.eq.s32.totalorder %s29, 0
      %p204 = por %p202, %p203
      %p205 = scmp.ne.s32.totalorder %s191, %s192
      %p206 = scmp.eq.s32.totalorder %s30, 1
      %p207 = por %p205, %p206
      %p209 = scmp.ne.s32.totalorder %s192, %s208
      %p210 = scmp.eq.s32.totalorder %s30, 0
      %p211 = por %p209, %p210
      %s212 = ssub.s32 %s31, %s43
      %s213 = ssub.s32 %s32, %s39
      %s214 = sor.u32 %s212, %s213
      %p215 = scmp.eq.s32.totalorder %s214, 0
      %s217 = sadd.s32 %s216, 1
      %s218 = scalar_select %p215, %s216, %s217
      %p221 = pneg %p215
      %p222 = scmp.eq.s32.totalorder %s24, 1
      %p223 = por %p221, %p222
      %p224 = scmp.ne.s32.totalorder %s216, %s219
      %p225 = scmp.eq.s32.totalorder %s24, 0
      %p226 = por %p224, %p225
      %p227 = scmp.ne.s32.totalorder %s216, %s219
      %p228 = scmp.eq.s32.totalorder %s29, 1
      %p229 = por %p227, %p228
      %p230 = scmp.ne.s32.totalorder %s219, %s220
      %p231 = scmp.eq.s32.totalorder %s29, 0
      %p232 = por %p230, %p231
      %p233 = scmp.ne.s32.totalorder %s219, %s220
      %p234 = scmp.eq.s32.totalorder %s30, 1
      %p235 = por %p233, %p234
      %p237 = scmp.ne.s32.totalorder %s220, %s236
      %p238 = scmp.eq.s32.totalorder %s30, 0
      %p239 = por %p237, %p238
      %p240 = scmp.le.s32.totalorder 1, %s24
      %p241 = scmp.lt.s32.totalorder %s24, 3
      %p242 = pnand %p240, %p241
      %p243 = pneg %p242
      // Predicated region
      $region9: #{tpu_custom_call.1} parent=5 // pred_check
        _
      $region10: #{tpu_custom_call.1} parent=5 // pred_check_branch
        %245 = sbr.rel (%p242) target = $region12
      $region11: #{tpu_custom_call.1} parent=5 // pred_region
        %s246 = ssub.s32 %s24, 1
        // Predicated region
        $region13: #{tpu_custom_call.1} parent=11 // pred_check
          %p247 = pneg %p85
        $region14: #{tpu_custom_call.1} parent=11 // pred_check_branch
          %249 = sbr.rel (%p247) target = $region16
        $region15: #{tpu_custom_call.1} parent=11 // pred_region
          _
        $region16: #{tpu_custom_call.1} parent=11 // pred_fallthru
          _
        // Predicated region
        $region17: #{tpu_custom_call.1} parent=11 // pred_check
          %p250 = pneg %p106
        $region18: #{tpu_custom_call.1} parent=11 // pred_check_branch
          %252 = sbr.rel (%p250) target = $region20
        $region19: #{tpu_custom_call.1} parent=11 // pred_region
          _
        $region20: #{tpu_custom_call.1} parent=11 // pred_fallthru
          _
        // Predicated region
        $region21: #{tpu_custom_call.1} parent=11 // pred_check
          %p253 = pneg %p127
        $region22: #{tpu_custom_call.1} parent=11 // pred_check_branch
          %255 = sbr.rel (%p253) target = $region24
        $region23: #{tpu_custom_call.1} parent=11 // pred_region
          %s257 = ssub.s32 512, 512
          %258 = vsyncadd [#allocation6], %s257
          %s259 = sshll.u32 [#allocation5], 4
          %s260 = int_to_ptr.vmem [resolvable:$true] %s259
          %265 = dma.hbm_to_vmem [thread:$0]  %s3, 512, %s260, [#allocation6], 128, 128, 8
        $region24: #{tpu_custom_call.1} parent=11 // pred_fallthru
          _
        // Predicated region
        $region25: #{tpu_custom_call.1} parent=11 // pred_check
          %p266 = pneg %p148
        $region26: #{tpu_custom_call.1} parent=11 // pred_check_branch
          %268 = sbr.rel (%p266) target = $region28
        $region27: #{tpu_custom_call.1} parent=11 // pred_region
          _
        $region28: #{tpu_custom_call.1} parent=11 // pred_fallthru
          _
      $region12: #{tpu_custom_call.1} parent=5 // pred_fallthru
        _
      %p269 = scmp.lt.s32.totalorder %s24, 2
      // Predicated region
      $region29: #{tpu_custom_call.1} parent=5 // pred_check
        %p270 = pneg %p269
      $region30: #{tpu_custom_call.1} parent=5 // pred_check_branch
        %272 = sbr.rel (%p270) target = $region32
      $region31: #{tpu_custom_call.1} parent=5 // pred_region
        // Predicated region
        $region33: #{tpu_custom_call.1} parent=31 // pred_check
          %p273 = pneg %p58
        $region34: #{tpu_custom_call.1} parent=31 // pred_check_branch
          %275 = sbr.rel (%p273) target = $region36
        $region35: #{tpu_custom_call.1} parent=31 // pred_region
          %s276 = sand.u32 %s48, 1
          %s277 = scalar_lea.sflag [#allocation3], %s276
          %s278 = sand.u32 %s48, 1
          %s279 = smul.addr %s278, 8
          %s280 = scalar_lea.vmem [#allocation2], %s279
          %s282 = ssub.s32 128, 128
          %283 = vsyncadd %s277, %s282
          %s284 = sadd.s32 %s32, %s31
          %s285 = smul.addr %s284, 128
          %s286 = scalar_lea.hbm %s0, %s285
          %s288 = sshll.u32 %s280, 4
          %s289 = int_to_ptr.vmem [resolvable:$true] %s288
          %291 = dma.hbm_to_vmem [thread:$0]  %s286, 128, %s289, %s277
        $region36: #{tpu_custom_call.1} parent=31 // pred_fallthru
          _
      $region32: #{tpu_custom_call.1} parent=5 // pred_fallthru
        _
      %p292 = scmp.le.s32.totalorder 1, %s24
      %p293 = scmp.lt.s32.totalorder %s24, 3
      %p294 = pnand %p292, %p293
      %p295 = pneg %p294
      // Predicated region
      $region37: #{tpu_custom_call.1} parent=5 // pred_check
        _
      $region38: #{tpu_custom_call.1} parent=5 // pred_check_branch
        %297 = sbr.rel (%p294) target = $region40
      $region39: #{tpu_custom_call.1} parent=5 // pred_region
        %s298 = ssub.s32 %s24, 1
        %s299 = sand.u32 %s51, 1
        %s300 = scalar_lea.sflag [#allocation3], %s299
        %s301 = sand.u32 %s51, 1
        %s302 = smul.addr %s301, 8
        %s303 = scalar_lea.vmem [#allocation2], %s302
        // Predicated region
        $region41: #{tpu_custom_call.1} parent=39 // pred_check
          %p304 = pneg %p64
        $region42: #{tpu_custom_call.1} parent=39 // pred_check_branch
          %306 = sbr.rel (%p304) target = $region44
        $region43: #{tpu_custom_call.1} parent=39 // pred_region
          %307 = dma.done %s300, 128
        $region44: #{tpu_custom_call.1} parent=39 // pred_fallthru
          _
        // Predicated region
        $region45: #{tpu_custom_call.1} parent=39 // pred_check
          %p308 = pneg %p127
        $region46: #{tpu_custom_call.1} parent=39 // pred_check_branch
          %310 = sbr.rel (%p308) target = $region48
        $region47: #{tpu_custom_call.1} parent=39 // pred_region
          %311 = dma.done [#allocation6], 512
        $region48: #{tpu_custom_call.1} parent=39 // pred_fallthru
          _
        %s312 = sand.u32 %s51, 1
        %s313 = scalar_lea.sflag [#allocation3], %s312
        %s314 = sand.u32 %s51, 1
        %s315 = smul.addr %s314, 8
        %s316 = scalar_lea.vmem [#allocation2], %s315
        %p317 = pneg %p64
        %p318 = pneg %p61
        %p319 = pneg %p85
        %p320 = pneg %p82
        %p321 = pneg %p106
        %p322 = pneg %p103
        %p323 = pneg %p127
        %p324 = pneg %p124
        %p325 = pneg %p148
        %p326 = pneg %p145
        %p327 = pneg %p176
        %p328 = pneg %p173
        %s329 = sand.u32 %s163, 1
        %s330 = scalar_lea.sflag [#allocation4], %s329
        %s331 = sand.u32 %s163, 1
        %s332 = smul.addr %s331, 32
        %s333 = scalar_lea.vmem [#allocation7], %s332
        %p334 = pneg %p204
        %p335 = pneg %p201
        %s336 = sand.u32 %s29, 1
        %s337 = scalar_lea.sflag [#allocation9], %s336
        %s338 = sand.u32 %s191, 1
        %s339 = smul.addr %s338, 32
        %s340 = scalar_lea.vmem [#allocation8], %s339
        %p341 = pneg %p232
        %p342 = pneg %p229
        %s343 = sand.u32 %s29, 1
        %s344 = scalar_lea.sflag [#allocation9], %s343
        %s345 = sand.u32 %s219, 1
        %s346 = smul.addr %s345, 32
        %s347 = scalar_lea.vmem [#allocation10], %s346
        %v348 = vld [vmem:[%s303] sm:$0xff]
        %v349 = vld [vmem:[%s1] sm:$0x1]
        %v350 = vld [vmem:[%s2] sm:$0x1]
        %vm351 = vcmask 261120
        %v352 = vsel %vm351, %v348, 0.0
        %353 = vadd.xlane.f32.xlu0 %v352
        %v354 = vpop.xlane.xlu0 %353
        %v355 = vrcp.pop 32.0
        %v356 = vmul.f32 %v354, %v355
        %v357 = vsub.f32 %v348, %v356
        %v358 = vmul.f32 %v357, %v357
        %v359 = vsel %vm351, %v358, 0.0
        %360 = vadd.xlane.f32.xlu0 %v359
        %v361 = vpop.xlane.xlu0 %360
        %v362 = vmul.f32 %v361, 0.032258064
        %v363 = vrsqrt.pop %v362
        %v364 = vmul.f32 %v362, %v363
        %vm365 = vcmp.eq.f32.partialorder %v362, inf
        %v366 = vsel %vm365, %v362, %v364
        %vm367 = vcmp.eq.f32.partialorder %v362, 0.0
        %v368 = vand.u32 %v362, 2147483648
        %v369 = vsel %vm367, %v368, %v366
        %v370 = vadd.f32 %v369, 1e-06
        %v371 = vrcp.pop %v370
        %v373 = vlaneseq
        %v374 = vshrl.u32 %v373, 7
        %v375 = vsub.s32 0, %v374
        %v376 = vrot.slane %v349, %v375
        %v378 = vmul.f32 %v376, %v357
        %v379 = vmul.f32 %v378, %v371
        %v381 = vlaneseq
        %v382 = vshrl.u32 %v381, 7
        %v383 = vsub.s32 0, %v382
        %v384 = vrot.slane %v350, %v383
        %v386 = vadd.f32 %v379, %v384
        %v387 = vld [vmem:[#allocation5] sm:$0xff]
        %v388 = vld [vmem:[#allocation5 + $0x8] sm:$0xff]
        %v389 = vld [vmem:[#allocation5 + $0x10] sm:$0xff]
        %v390 = vld [vmem:[#allocation5 + $0x18] sm:$0xff]
        %v391 = vld [vmem:[%s4] sm:$0x1]
        %v393 = vlaneseq
        %v394 = vshrl.u32 %v393, 7
        %v395 = vsub.s32 0, %v394
        %v396 = vrot.slane %v391, %v395
        %v399 = vsel %vm351, %v386, 0
        %401 = vmatprep.subr.mxu0 0.0
        %402 = vmatpush1.msra.mxu0 %v387
        %403 = vmatprep.subr.mxu0 0.0
        %404 = vmatpush1.msra.mxu0 %v388
        %405 = vmatprep.subr.mxu0 0.0
        %406 = vmatpush1.msra.mxu0 %v389
        %407 = vmatprep.subr.mxu0 0.0
        %408 = vmatpush1.msra.mxu0 %v390
        %409 = vmatprep.subr.mxu0 0.0
        %410 = vmatpush1.msra.mxu0 0.0
        %411 = vmatprep.subr.mxu0 0.0
        %412 = vmatpush1.msra.mxu0 0.0
        %413 = vmatprep.subr.mxu0 0.0
        %414 = vmatpush1.msra.mxu0 0.0
        %415 = vmatprep.subr.mxu0 0.0
        %416 = vmatpush1.msra.mxu0 0.0
        %417 = vmatprep.subr.mxu0 0.0
        %418 = vmatpush1.msra.mxu0 0.0
        %419 = vmatprep.subr.mxu0 0.0
        %420 = vmatpush1.msra.mxu0 0.0
        %421 = vmatprep.subr.mxu0 0.0
        %422 = vmatpush1.msra.mxu0 0.0
        %423 = vmatprep.subr.mxu0 0.0
        %424 = vmatpush1.msra.mxu0 0.0
        %425 = vmatprep.subr.mxu0 0.0
        %426 = vmatpush1.msra.mxu0 0.0
        %427 = vmatprep.subr.mxu0 0.0
        %428 = vmatpush1.msra.mxu0 0.0
        %429 = vmatprep.subr.mxu0 0.0
        %430 = vmatpush1.msra.mxu0 0.0
        %431 = vmatprep.subr.mxu0 0.0
        %432 = vmatpush1.msra.mxu0 0.0
        %433 = vmatprep.subr.mxu0 0.0
        %434 = vmatpush1.msra.mxu0 0.0
        %435 = vmatprep.subr.mxu0 0.0
        %436 = vmatpush1.msra.mxu0 0.0
        %437 = vmatprep.subr.mxu0 0.0
        %438 = vmatpush1.msra.mxu0 0.0
        %439 = vmatprep.subr.mxu0 0.0
        %440 = vmatpush1.msra.mxu0 0.0
        %441 = vmatprep.subr.mxu0 0.0
        %442 = vmatpush1.msra.mxu0 0.0
        %443 = vmatprep.subr.mxu0 0.0
        %444 = vmatpush1.msra.mxu0 0.0
        %445 = vmatprep.subr.mxu0 0.0
        %446 = vmatpush1.msra.mxu0 0.0
        %447 = vmatprep.subr.mxu0 0.0
        %448 = vmatpush1.msra.mxu0 0.0
        %449 = vmatprep.subr.mxu0 0.0
        %450 = vmatpush1.msra.mxu0 0.0
        %451 = vmatprep.subr.mxu0 0.0
        %452 = vmatpush1.msra.mxu0 0.0
        %453 = vmatprep.subr.mxu0 0.0
        %454 = vmatpush1.msra.mxu0 0.0
        %455 = vmatprep.subr.mxu0 0.0
        %456 = vmatpush1.msra.mxu0 0.0
        %457 = vmatprep.subr.mxu0 0.0
        %458 = vmatpush1.msra.mxu0 0.0
        %459 = vmatprep.subr.mxu0 0.0
        %460 = vmatpush1.msra.mxu0 0.0
        %461 = vmatprep.subr.mxu0 0.0
        %462 = vmatpush1.msra.mxu0 0.0
        %463 = vmatprep.subr.mxu0 0.0
        %464 = vmatpush1.msra.mxu0 0.0
        %465 = vmatprep.mubr.f32.mxu0 0.0
        %466 = vmatmul.mubr.f32.gmra.mrb[0].mxu0 %v399
        %v467 = vpop.f32.mrb[0].mxu0
        %v468 = vadd.f32 %v396, %v467
        %v469 = vpop.f32.mrb[0].mxu0
        %470 = vdwg.mxu0
        %vm471 = vcmask 64512
        %472 = vst.msk [vmem:[%s333] sm:$0xff] %vm471, %v468
        %474 = vrot.lane.b32.xlu0 %v468, 96
        %v475 = vpop.permute.xlu0 %474
        %477 = vst.msk [vmem:[%s340] sm:$0xff] %vm471, %v475
        %478 = vrot.lane.b32.xlu0 %v468, 64
        %v479 = vpop.permute.xlu0 %478
        %481 = vst.msk [vmem:[%s347] sm:$0xff] %vm471, %v479
        %482 = vrot.lane.b32.xlu0 %v468, 120
        %v483 = vpop.permute.xlu0 %482
        %s485 = scalar_lea.vmem %s333, 8 [#allocation7]
        %486 = vst.msk [vmem:[%s485] sm:$0xff] %vm471, %v483
        %487 = vrot.lane.b32.xlu0 %v468, 88
        %v488 = vpop.permute.xlu0 %487
        %s490 = scalar_lea.vmem %s340, 8 [#allocation8]
        %491 = vst.msk [vmem:[%s490] sm:$0xff] %vm471, %v488
        %492 = vrot.lane.b32.xlu0 %v468, 56
        %v493 = vpop.permute.xlu0 %492
        %s495 = scalar_lea.vmem %s347, 8 [#allocation10]
        %496 = vst.msk [vmem:[%s495] sm:$0xff] %vm471, %v493
        %497 = vrot.lane.b32.xlu0 %v468, 112
        %v498 = vpop.permute.xlu0 %497
        %s500 = scalar_lea.vmem %s333, 16 [#allocation7]
        %501 = vst.msk [vmem:[%s500] sm:$0xff] %vm471, %v498
        %502 = vrot.lane.b32.xlu0 %v468, 80
        %v503 = vpop.permute.xlu0 %502
        %s505 = scalar_lea.vmem %s340, 16 [#allocation8]
        %506 = vst.msk [vmem:[%s505] sm:$0xff] %vm471, %v503
        %507 = vrot.lane.b32.xlu0 %v468, 48
        %v508 = vpop.permute.xlu0 %507
        %s510 = scalar_lea.vmem %s347, 16 [#allocation10]
        %511 = vst.msk [vmem:[%s510] sm:$0xff] %vm471, %v508
        %512 = vrot.lane.b32.xlu0 %v468, 104
        %v513 = vpop.permute.xlu0 %512
        %s515 = scalar_lea.vmem %s333, 24 [#allocation7]
        %516 = vst.msk [vmem:[%s515] sm:$0xff] %vm471, %v513
        %517 = vrot.lane.b32.xlu0 %v468, 72
        %v518 = vpop.permute.xlu0 %517
        %s520 = scalar_lea.vmem %s340, 24 [#allocation8]
        %521 = vst.msk [vmem:[%s520] sm:$0xff] %vm471, %v518
        %522 = vrot.lane.b32.xlu0 %v468, 40
        %v523 = vpop.permute.xlu0 %522
        %s525 = scalar_lea.vmem %s347, 24 [#allocation10]
        %526 = vst.msk [vmem:[%s525] sm:$0xff] %vm471, %v523
        %s527 = sand.u32 %s163, 1
        %s528 = scalar_lea.sflag [#allocation4], %s527
        %s529 = sand.u32 %s163, 1
        %s530 = smul.addr %s529, 32
        %s531 = scalar_lea.vmem [#allocation7], %s530
        %s532 = sand.u32 %s29, 1
        %s533 = scalar_lea.sflag [#allocation9], %s532
        %s534 = sand.u32 %s191, 1
        %s535 = smul.addr %s534, 32
        %s536 = scalar_lea.vmem [#allocation8], %s535
        %s537 = sand.u32 %s29, 1
        %s538 = scalar_lea.sflag [#allocation9], %s537
        %s539 = sand.u32 %s219, 1
        %s540 = smul.addr %s539, 32
        %s541 = scalar_lea.vmem [#allocation10], %s540
        // Predicated region
        $region49: #{tpu_custom_call.1} parent=39 // pred_check
          %p542 = pneg %p173
        $region50: #{tpu_custom_call.1} parent=39 // pred_check_branch
          %544 = sbr.rel (%p542) target = $region52
        $region51: #{tpu_custom_call.1} parent=39 // pred_region
          %s546 = ssub.s32 512, 512
          %547 = vsyncadd %s528, %s546
          %s548 = smul.addr %s33, 4
          %s549 = sadd.s32 %s34, %s548
          %s550 = smul.addr %s549, 128
          %s551 = scalar_lea.hbm %s5, %s550
          %s552 = sshll.u32 %s531, 4
          %s553 = int_to_ptr.vmem [resolvable:$true] %s552
          %558 = dma.vmem_to_hbm [thread:$0]  %s553, 512, %s551, %s528, 128, 128, 8
        $region52: #{tpu_custom_call.1} parent=39 // pred_fallthru
          _
        // Predicated region
        $region53: #{tpu_custom_call.1} parent=39 // pred_check
          %p559 = pneg %p201
        $region54: #{tpu_custom_call.1} parent=39 // pred_check_branch
          %561 = sbr.rel (%p559) target = $region56
        $region55: #{tpu_custom_call.1} parent=39 // pred_region
          %s563 = ssub.s32 512, 512
          %564 = vsyncadd %s533, %s563
          %s565 = smul.addr %s33, 4
          %s566 = sadd.s32 %s34, %s565
          %s567 = smul.addr %s566, 128
          %s568 = scalar_lea.hbm %s6, %s567
          %s569 = sshll.u32 %s536, 4
          %s570 = int_to_ptr.vmem [resolvable:$true] %s569
          %575 = dma.vmem_to_hbm [thread:$0]  %s570, 512, %s568, %s533, 128, 128, 8
        $region56: #{tpu_custom_call.1} parent=39 // pred_fallthru
          _
        // Predicated region
        $region57: #{tpu_custom_call.1} parent=39 // pred_check
          %p576 = pneg %p229
        $region58: #{tpu_custom_call.1} parent=39 // pred_check_branch
          %578 = sbr.rel (%p576) target = $region60
        $region59: #{tpu_custom_call.1} parent=39 // pred_region
          %s580 = ssub.s32 512, 512
          %581 = vsyncadd %s538, %s580
          %s582 = smul.addr %s33, 4
          %s583 = sadd.s32 %s34, %s582
          %s584 = smul.addr %s583, 128
          %s585 = scalar_lea.hbm %s7, %s584
          %s586 = sshll.u32 %s541, 4
          %s587 = int_to_ptr.vmem [resolvable:$true] %s586
          %592 = dma.vmem_to_hbm [thread:$0]  %s587, 512, %s585, %s538, 128, 128, 8
        $region60: #{tpu_custom_call.1} parent=39 // pred_fallthru
          _
      $region40: #{tpu_custom_call.1} parent=5 // pred_fallthru
        _
      %p593 = scmp.le.s32.totalorder 2, %s24
      // Predicated region
      $region61: #{tpu_custom_call.1} parent=5 // pred_check
        %p594 = pneg %p593
      $region62: #{tpu_custom_call.1} parent=5 // pred_check_branch
        %596 = sbr.rel (%p594) target = $region64
      $region63: #{tpu_custom_call.1} parent=5 // pred_region
        %s597 = ssub.s32 %s24, 2
        // Predicated region
        $region65: #{tpu_custom_call.1} parent=63 // pred_check
          %p598 = pneg %p179
        $region66: #{tpu_custom_call.1} parent=63 // pred_check_branch
          %600 = sbr.rel (%p598) target = $region68
        $region67: #{tpu_custom_call.1} parent=63 // pred_region
          %s601 = sand.u32 %s164, 1
          %s602 = scalar_lea.sflag [#allocation4], %s601
          %s603 = sand.u32 %s164, 1
          %s604 = smul.addr %s603, 32
          %s605 = scalar_lea.vmem [#allocation7], %s604
          %606 = dma.done %s602, 512
        $region68: #{tpu_custom_call.1} parent=63 // pred_fallthru
          _
        // Predicated region
        $region69: #{tpu_custom_call.1} parent=63 // pred_check
          %p607 = pneg %p207
        $region70: #{tpu_custom_call.1} parent=63 // pred_check_branch
          %609 = sbr.rel (%p607) target = $region72
        $region71: #{tpu_custom_call.1} parent=63 // pred_region
          %s610 = sand.u32 %s30, 1
          %s611 = scalar_lea.sflag [#allocation9], %s610
          %s612 = sand.u32 %s192, 1
          %s613 = smul.addr %s612, 32
          %s614 = scalar_lea.vmem [#allocation8], %s613
          %615 = dma.done %s611, 512
        $region72: #{tpu_custom_call.1} parent=63 // pred_fallthru
          _
        // Predicated region
        $region73: #{tpu_custom_call.1} parent=63 // pred_check
          %p616 = pneg %p235
        $region74: #{tpu_custom_call.1} parent=63 // pred_check_branch
          %618 = sbr.rel (%p616) target = $region76
        $region75: #{tpu_custom_call.1} parent=63 // pred_region
          %s619 = sand.u32 %s30, 1
          %s620 = scalar_lea.sflag [#allocation9], %s619
          %s621 = sand.u32 %s220, 1
          %s622 = smul.addr %s621, 32
          %s623 = scalar_lea.vmem [#allocation10], %s622
          %624 = dma.done %s620, 512
        $region76: #{tpu_custom_call.1} parent=63 // pred_fallthru
          _
      $region64: #{tpu_custom_call.1} parent=5 // pred_fallthru
        _
    $region6: #{tpu_custom_call.1} parent=1 // loop_footer
      %s28 = sadd.s32 1, %s24
    $region7: #{tpu_custom_call.1} parent=1 // loop_footer_branch
      %23 = sbr.rel target = $region3
    $region8: #{tpu_custom_call.1} parent=1 // loop_exit
      _
    %625 = vsyncpa [#allocation3], 1
    %s626 = scalar_lea.sflag [#allocation3], 1
    %627 = vsyncpa %s626, 1
    %628 = vsyncpa [#allocation6], 1
    %629 = vsyncpa [#allocation4], 1
    %s630 = scalar_lea.sflag [#allocation4], 1
    %631 = vsyncpa %s630, 1
    %632 = vsyncpa [#allocation9], 1
    %s633 = scalar_lea.sflag [#allocation9], 1
    %634 = vsyncpa %s633, 1

</llo_original>
